<compile_context>
chip_gen: v5e
topology: v5e:2x2
jax: 0.10.0
libtpu: 0.0.40
codegen_flags: <defaults>
</compile_context>

<pallas_src>
import functools

import jax
import jax.numpy as jnp
from jax.experimental import pallas as pl
from jax.experimental.pallas import tpu as pltpu


# Logical (PyTorch) dims and lane-padded dims.
D_IN, D_H, D_Z = 729, 200, 24
D_IN_P, D_H_P, D_Z_P = 768, 256, 128


def _round_up(n, m):
    return ((n + m - 1) // m) * m


def ae_kernel(x_ref, w1_ref, b1_ref, w2_ref, b2_ref, w3_ref, b3_ref, w4_ref, b4_ref,
              out_ref):
    # One batch tile per grid step; weights/biases are VMEM-resident across steps.
    x = x_ref[...]                                                                  # (TB, 768)

    # encode
    h1 = jnp.dot(x, w1_ref[...], preferred_element_type=jnp.float32) + b1_ref[...]  # (TB, 256)
    h1 = jnp.maximum(h1, 0.0)                                                        # ReLU
    z = jnp.dot(h1, w2_ref[...], preferred_element_type=jnp.float32) + b2_ref[...]  # (TB, 128)

    # decode
    h3 = jnp.dot(z, w3_ref[...], preferred_element_type=jnp.float32) + b3_ref[...]  # (TB, 256)
    h3 = jnp.maximum(h3, 0.0)                                                        # ReLU
    y = jnp.dot(h3, w4_ref[...], preferred_element_type=jnp.float32) + b4_ref[...]  # (TB, 768)

    out_ref[...] = jax.nn.sigmoid(y)


@functools.partial(jax.jit, static_argnames=("tile_b",))
def ae_forward(x, padded_params, *, tile_b=256):
    """x: any shape whose trailing elements reshape to (-1, 729), like x.view(-1, 729)."""
    w1, b1, w2, b2, w3, b3, w4, b4 = padded_params
    x2d = jnp.reshape(x, (-1, D_IN)).astype(jnp.float32)
    B = x2d.shape[0]

    # Tile the batch; for tiny batches shrink the tile instead of padding to 256.
    tb = min(tile_b, _round_up(B, 8))
    b_pad = _round_up(B, tb)
    x_p = jnp.pad(x2d, ((0, b_pad - B), (0, D_IN_P - D_IN)))
    grid = (b_pad // tb,)

    # Advisory cost estimate (padded FLOPs, sigmoid transcendentals, HBM bytes).
    flops = 2 * b_pad * (D_IN_P * D_H_P + D_H_P * D_Z_P + D_Z_P * D_H_P + D_H_P * D_IN_P)
    weight_bytes = 4 * (2 * D_IN_P * D_H_P + 2 * D_H_P * D_Z_P
                        + 2 * D_H_P + D_Z_P + D_IN_P)
    bytes_accessed = 2 * 4 * b_pad * D_IN_P + weight_bytes

    out = pl.pallas_call(
        ae_kernel,
        out_shape=jax.ShapeDtypeStruct((b_pad, D_IN_P), jnp.float32),
        grid=grid,
        in_specs=[
            pl.BlockSpec((tb, D_IN_P), lambda i: (i, 0)),       # x tile (pipelined)
            pl.BlockSpec((D_IN_P, D_H_P), lambda i: (0, 0)),    # w1 (resident)
            pl.BlockSpec((1, D_H_P), lambda i: (0, 0)),         # b1
            pl.BlockSpec((D_H_P, D_Z_P), lambda i: (0, 0)),     # w2
            pl.BlockSpec((1, D_Z_P), lambda i: (0, 0)),         # b2
            pl.BlockSpec((D_Z_P, D_H_P), lambda i: (0, 0)),     # w3
            pl.BlockSpec((1, D_H_P), lambda i: (0, 0)),         # b3
            pl.BlockSpec((D_H_P, D_IN_P), lambda i: (0, 0)),    # w4
            pl.BlockSpec((1, D_IN_P), lambda i: (0, 0)),        # b4
        ],
        out_specs=pl.BlockSpec((tb, D_IN_P), lambda i: (i, 0)),
        compiler_params=pltpu.CompilerParams(
            dimension_semantics=("parallel",),       # batch tiles across TCs on v7x
            vmem_limit_bytes=32 * 1024 * 1024,       # tiles + resident weights << 32 MiB
        ),
        cost_estimate=pl.CostEstimate(
            flops=flops,
            transcendentals=b_pad * D_IN_P,
            bytes_accessed=bytes_accessed,
        ),
    )(x_p, w1, b1, w2, b2, w3, b3, w4, b4)

    # Drop batch padding and the padded (always-sigmoid(0)) feature lanes.
    return out[:B, :D_IN]


def init_params(key):
    """Deterministic init mimicking PyTorch nn.Linear default (uniform +/- 1/sqrt(fan_in)).
    Weights are returned already transposed to (in_features, out_features), logical shapes."""
    dims = [(D_IN, D_H), (D_H, D_Z), (D_Z, D_H), (D_H, D_IN)]
    params = []
    keys = jax.random.split(key, 2 * len(dims))
    for i, (fan_in, fan_out) in enumerate(dims):
        bound = 1.0 / (fan_in ** 0.5)
        w = jax.random.uniform(keys[2 * i], (fan_in, fan_out),
                               minval=-bound, maxval=bound, dtype=jnp.float32)
        b = jax.random.uniform(keys[2 * i + 1], (1, fan_out),
                               minval=-bound, maxval=bound, dtype=jnp.float32)
        params += [w, b]
    return tuple(params)


def pad_params(params):
    """Zero-pad logical params to lane-aligned shapes (done once, outside the kernel)."""
    w1, b1, w2, b2, w3, b3, w4, b4 = params

    def pw(w, rows, cols):
        return jnp.pad(w, ((0, rows - w.shape[0]), (0, cols - w.shape[1])))

    def pb(b, cols):
        return jnp.pad(b, ((0, 0), (0, cols - b.shape[1])))

    return (pw(w1, D_IN_P, D_H_P), pb(b1, D_H_P),
            pw(w2, D_H_P, D_Z_P), pb(b2, D_Z_P),
            pw(w3, D_Z_P, D_H_P), pb(b3, D_H_P),
            pw(w4, D_H_P, D_IN_P), pb(b4, D_IN_P))


def ae_reference(x, params):
    """Pure-JAX reference of the same forward pass (unpadded) for a correctness check."""
    w1, b1, w2, b2, w3, b3, w4, b4 = params
    x2d = jnp.reshape(x, (-1, D_IN)).astype(jnp.float32)
    h1 = jax.nn.relu(x2d @ w1 + b1)
    z = h1 @ w2 + b2
    h3 = jax.nn.relu(z @ w3 + b3)
    return jax.nn.sigmoid(h3 @ w4 + b4)


if __name__ == "__main__":
    key = jax.random.PRNGKey(0)
    pkey, xkey = jax.random.split(key)
    params = init_params(pkey)
    padded_params = pad_params(params)

    # Small input consistent with the module: batch=2, 27x27 images (729 = 27*27),
    # flattened inside forward just like x.view(-1, 729).
    x = jax.random.normal(xkey, (2, 27, 27), dtype=jnp.float32)

    out = ae_forward(x, padded_params)
    out = jax.block_until_ready(out)

    ref = jax.block_until_ready(ae_reference(x, params))
    assert out.shape == (2, D_IN)
    assert jnp.allclose(out, ref, atol=1e-5, rtol=1e-5), "Pallas output mismatch vs reference"

    print("KERNEL_OK")
</pallas_src>

<mosaic_0001>
module attributes {stable_mosaic.version = 11 : i64} {
  func.func @ae_kernel(%arg0: i32, %arg1: memref<8x768xf32, #tpu.memory_space<vmem>>, %arg2: memref<768x256xf32, #tpu.memory_space<vmem>>, %arg3: memref<1x256xf32, #tpu.memory_space<vmem>>, %arg4: memref<256x128xf32, #tpu.memory_space<vmem>>, %arg5: memref<1x128xf32, #tpu.memory_space<vmem>>, %arg6: memref<128x256xf32, #tpu.memory_space<vmem>>, %arg7: memref<1x256xf32, #tpu.memory_space<vmem>>, %arg8: memref<256x768xf32, #tpu.memory_space<vmem>>, %arg9: memref<1x768xf32, #tpu.memory_space<vmem>>, %arg10: memref<8x768xf32, #tpu.memory_space<vmem>>) attributes {dimension_semantics = [#tpu.dimension_semantics<parallel>], iteration_bounds = array<i64: 1>, scalar_prefetch = 0 : i64, scratch_operands = 0 : i64, tpu.core_type = #tpu.core_type<tc>, window_params = [{transform_indices = @transform_0, window_bounds = array<i64: 8, 768>}, {pipeline_mode = #tpu.pipeline_mode<synchronous>, transform_indices = @transform_1, window_bounds = array<i64: 768, 256>}, {pipeline_mode = #tpu.pipeline_mode<synchronous>, transform_indices = @transform_2, window_bounds = array<i64: 1, 256>}, {pipeline_mode = #tpu.pipeline_mode<synchronous>, transform_indices = @transform_3, window_bounds = array<i64: 256, 128>}, {pipeline_mode = #tpu.pipeline_mode<synchronous>, transform_indices = @transform_4, window_bounds = array<i64: 1, 128>}, {pipeline_mode = #tpu.pipeline_mode<synchronous>, transform_indices = @transform_5, window_bounds = array<i64: 128, 256>}, {pipeline_mode = #tpu.pipeline_mode<synchronous>, transform_indices = @transform_6, window_bounds = array<i64: 1, 256>}, {pipeline_mode = #tpu.pipeline_mode<synchronous>, transform_indices = @transform_7, window_bounds = array<i64: 256, 768>}, {pipeline_mode = #tpu.pipeline_mode<synchronous>, transform_indices = @transform_8, window_bounds = array<i64: 1, 768>}, {transform_indices = @transform_9, window_bounds = array<i64: 8, 768>}]} {
    %c0 = arith.constant 0 : index
    %c0_0 = arith.constant 0 : index
    %0 = vector.load %arg1[%c0, %c0_0] : memref<8x768xf32, #tpu.memory_space<vmem>>, vector<8x768xf32>
    %c0_1 = arith.constant 0 : index
    %c0_2 = arith.constant 0 : index
    %1 = vector.load %arg2[%c0_1, %c0_2] : memref<768x256xf32, #tpu.memory_space<vmem>>, vector<768x256xf32>
    %cst = arith.constant dense<0.000000e+00> : vector<8x256xf32>
    %2 = tpu.matmul %0, %1, %cst {dimension_numbers = #tpu.dot_dimension_numbers<[1], [0], [0], [1], [0, 0, 1, 1], [], []>} : vector<8x768xf32>, vector<768x256xf32>, vector<8x256xf32> -> vector<8x256xf32>
    %c0_3 = arith.constant 0 : index
    %c0_4 = arith.constant 0 : index
    %3 = vector.load %arg3[%c0_3, %c0_4] : memref<1x256xf32, #tpu.memory_space<vmem>>, vector<1x256xf32>
    %4 = vector.broadcast %3 : vector<1x256xf32> to vector<8x256xf32>
    %5 = arith.addf %2, %4 : vector<8x256xf32>
    %cst_5 = arith.constant 0.000000e+00 : f32
    %6 = vector.broadcast %cst_5 : f32 to vector<8x256xf32>
    %7 = arith.maximumf %5, %6 : vector<8x256xf32>
    %c0_6 = arith.constant 0 : index
    %c0_7 = arith.constant 0 : index
    %8 = vector.load %arg4[%c0_6, %c0_7] : memref<256x128xf32, #tpu.memory_space<vmem>>, vector<256x128xf32>
    %cst_8 = arith.constant dense<0.000000e+00> : vector<8x128xf32>
    %9 = tpu.matmul %7, %8, %cst_8 {dimension_numbers = #tpu.dot_dimension_numbers<[1], [0], [0], [1], [0, 0, 1, 1], [], []>} : vector<8x256xf32>, vector<256x128xf32>, vector<8x128xf32> -> vector<8x128xf32>
    %c0_9 = arith.constant 0 : index
    %c0_10 = arith.constant 0 : index
    %10 = vector.load %arg5[%c0_9, %c0_10] : memref<1x128xf32, #tpu.memory_space<vmem>>, vector<1x128xf32>
    %11 = vector.broadcast %10 : vector<1x128xf32> to vector<8x128xf32>
    %12 = arith.addf %9, %11 : vector<8x128xf32>
    %c0_11 = arith.constant 0 : index
    %c0_12 = arith.constant 0 : index
    %13 = vector.load %arg6[%c0_11, %c0_12] : memref<128x256xf32, #tpu.memory_space<vmem>>, vector<128x256xf32>
    %cst_13 = arith.constant dense<0.000000e+00> : vector<8x256xf32>
    %14 = tpu.matmul %12, %13, %cst_13 {dimension_numbers = #tpu.dot_dimension_numbers<[1], [0], [0], [1], [0, 0, 1, 1], [], []>} : vector<8x128xf32>, vector<128x256xf32>, vector<8x256xf32> -> vector<8x256xf32>
    %c0_14 = arith.constant 0 : index
    %c0_15 = arith.constant 0 : index
    %15 = vector.load %arg7[%c0_14, %c0_15] : memref<1x256xf32, #tpu.memory_space<vmem>>, vector<1x256xf32>
    %16 = vector.broadcast %15 : vector<1x256xf32> to vector<8x256xf32>
    %17 = arith.addf %14, %16 : vector<8x256xf32>
    %cst_16 = arith.constant 0.000000e+00 : f32
    %18 = vector.broadcast %cst_16 : f32 to vector<8x256xf32>
    %19 = arith.maximumf %17, %18 : vector<8x256xf32>
    %c0_17 = arith.constant 0 : index
    %c0_18 = arith.constant 0 : index
    %20 = vector.load %arg8[%c0_17, %c0_18] : memref<256x768xf32, #tpu.memory_space<vmem>>, vector<256x768xf32>
    %cst_19 = arith.constant dense<0.000000e+00> : vector<8x768xf32>
    %21 = tpu.matmul %19, %20, %cst_19 {dimension_numbers = #tpu.dot_dimension_numbers<[1], [0], [0], [1], [0, 0, 1, 1], [], []>} : vector<8x256xf32>, vector<256x768xf32>, vector<8x768xf32> -> vector<8x768xf32>
    %c0_20 = arith.constant 0 : index
    %c0_21 = arith.constant 0 : index
    %22 = vector.load %arg9[%c0_20, %c0_21] : memref<1x768xf32, #tpu.memory_space<vmem>>, vector<1x768xf32>
    %23 = vector.broadcast %22 : vector<1x768xf32> to vector<8x768xf32>
    %24 = arith.addf %21, %23 : vector<8x768xf32>
    %25 = arith.negf %24 : vector<8x768xf32>
    %26 = math.exp %25 : vector<8x768xf32>
    %cst_22 = arith.constant 1.000000e+00 : f32
    %27 = vector.broadcast %cst_22 : f32 to vector<8x768xf32>
    %28 = arith.addf %27, %26 : vector<8x768xf32>
    %29 = arith.divf %27, %28 : vector<8x768xf32>
    %c0_23 = arith.constant 0 : index
    %c0_24 = arith.constant 0 : index
    %30 = vector.load %arg10[%c0_23, %c0_24] : memref<8x768xf32, #tpu.memory_space<vmem>>, vector<8x768xf32>
    tpu.vector_store %arg10[%c0_23, %c0_24], %29 {strides = array<i32>} : memref<8x768xf32, #tpu.memory_space<vmem>>, vector<8x768xf32>,
    return
  }
  func.func @transform_0(%arg0: i32) -> (i32, i32) {
    %c0_i32 = arith.constant 0 : i32
    %c0_i32_0 = arith.constant 0 : i32
    return %arg0, %c0_i32 : i32, i32
  }
  func.func @transform_1(%arg0: i32) -> (i32, i32) {
    %c0_i32 = arith.constant 0 : i32
    %c0_i32_0 = arith.constant 0 : i32
    %c0_i32_1 = arith.constant 0 : i32
    return %c0_i32, %c0_i32_0 : i32, i32
  }
  func.func @transform_2(%arg0: i32) -> (i32, i32) {
    %c0_i32 = arith.constant 0 : i32
    %c0_i32_0 = arith.constant 0 : i32
    %c0_i32_1 = arith.constant 0 : i32
    return %c0_i32, %c0_i32_0 : i32, i32
  }
  func.func @transform_3(%arg0: i32) -> (i32, i32) {
    %c0_i32 = arith.constant 0 : i32
    %c0_i32_0 = arith.constant 0 : i32
    %c0_i32_1 = arith.constant 0 : i32
    return %c0_i32, %c0_i32_0 : i32, i32
  }
  func.func @transform_4(%arg0: i32) -> (i32, i32) {
    %c0_i32 = arith.constant 0 : i32
    %c0_i32_0 = arith.constant 0 : i32
    %c0_i32_1 = arith.constant 0 : i32
    return %c0_i32, %c0_i32_0 : i32, i32
  }
  func.func @transform_5(%arg0: i32) -> (i32, i32) {
    %c0_i32 = arith.constant 0 : i32
    %c0_i32_0 = arith.constant 0 : i32
    %c0_i32_1 = arith.constant 0 : i32
    return %c0_i32, %c0_i32_0 : i32, i32
  }
  func.func @transform_6(%arg0: i32) -> (i32, i32) {
    %c0_i32 = arith.constant 0 : i32
    %c0_i32_0 = arith.constant 0 : i32
    %c0_i32_1 = arith.constant 0 : i32
    return %c0_i32, %c0_i32_0 : i32, i32
  }
  func.func @transform_7(%arg0: i32) -> (i32, i32) {
    %c0_i32 = arith.constant 0 : i32
    %c0_i32_0 = arith.constant 0 : i32
    %c0_i32_1 = arith.constant 0 : i32
    return %c0_i32, %c0_i32_0 : i32, i32
  }
  func.func @transform_8(%arg0: i32) -> (i32, i32) {
    %c0_i32 = arith.constant 0 : i32
    %c0_i32_0 = arith.constant 0 : i32
    %c0_i32_1 = arith.constant 0 : i32
    return %c0_i32, %c0_i32_0 : i32, i32
  }
  func.func @transform_9(%arg0: i32) -> (i32, i32) {
    %c0_i32 = arith.constant 0 : i32
    %c0_i32_0 = arith.constant 0 : i32
    return %arg0, %c0_i32 : i32, i32
  }
}

</mosaic_0001>

<llo_original>
// kernel: ae_forward.1
$region0: #{ae_forward.1}
  #allocation0 [shape = 'u32[]', space=smem, size = 0x4, offset = 0x4, fixed_abs, tag = 'smem constant byte address 0x4 - core index']
  #allocation1 [shape = 'u32[72,128]{1,0:T(1,128)}', space=vmem, size = 0x9000, scoped, tag = 'internal scratch']
  %s0 = inlined_call_operand.vmem [shape: f32[8,768], index: 0, kind: input, shape index: {}]
  %s1 = inlined_call_operand.hbm [shape: f32[768,256], index: 1, kind: input, shape index: {}]
  %s2 = inlined_call_operand.hbm [shape: f32[1,256], index: 2, kind: input, shape index: {}]
  %s3 = inlined_call_operand.vmem [shape: f32[256,128], index: 3, kind: input, shape index: {}]
  %s4 = inlined_call_operand.vmem [shape: f32[1,128], index: 4, kind: input, shape index: {}]
  %s5 = inlined_call_operand.hbm [shape: f32[128,256], index: 5, kind: input, shape index: {}]
  %s6 = inlined_call_operand.vmem [shape: f32[1,256], index: 6, kind: input, shape index: {}]
  %s7 = inlined_call_operand.hbm [shape: f32[256,768], index: 7, kind: input, shape index: {}]
  %s8 = inlined_call_operand.hbm [shape: f32[1,768], index: 8, kind: input, shape index: {}]
  %s9 = inlined_call_operand.vmem [shape: f32[8,768], index: 9, kind: output, shape index: {}]
  %s10 = sld [smem:[#allocation0]]
  $region66: #{ae_forward.1} parent=0
    _
  %s12 = ssub.s32 1, %s10
  %s13 = scalar_select 0, %s12, %s10
  $region1: #{ae_forward.1} parent=0
    #allocation2 [shape = 'u8[786432]{0}', space=vmem, size = 0xc0000, scoped, tag = 'input window, operand 1, single buffered']
    #allocation3 [shape = 's32[1]{0}', space=sflag, size = 0x4, scoped, tag = 'scoped memory for ae_forward.1']
    #allocation4 [shape = 'u8[1024]{0}', space=vmem, size = 0x400, scoped, tag = 'input window, operand 2, single buffered']
    #allocation5 [shape = 's32[1]{0}', space=sflag, size = 0x4, scoped, tag = 'scoped memory for ae_forward.1']
    #allocation6 [shape = 'u8[131072]{0}', space=vmem, size = 0x20000, scoped, tag = 'input window, operand 5, single buffered']
    #allocation7 [shape = 'u8[786432]{0}', space=vmem, size = 0xc0000, scoped, tag = 'input window, operand 7, single buffered']
    #allocation8 [shape = 's32[1]{0}', space=sflag, size = 0x4, scoped, tag = 'scoped memory for ae_forward.1']
    #allocation9 [shape = 'u8[3072]{0}', space=vmem, size = 0xc00, scoped, tag = 'input window, operand 8, single buffered']
    %14 = vsyncpa [#allocation3], 0
    %15 = vsyncpa [#allocation5], 0
    %16 = vsyncpa [#allocation8], 0
    // Predicated region
    $region2: #{ae_forward.1} parent=1 // pred_check
      _
    $region3: #{ae_forward.1} parent=1 // pred_check_branch
      %18 = sbr.rel (0) target = $region5
    $region4: #{ae_forward.1} parent=1 // pred_region
      _
    $region5: #{ae_forward.1} parent=1 // pred_fallthru
      _
    // Predicated region
    $region6: #{ae_forward.1} parent=1 // pred_check
      _
    $region7: #{ae_forward.1} parent=1 // pred_check_branch
      %20 = sbr.rel (0) target = $region9
    $region8: #{ae_forward.1} parent=1 // pred_region
      %22 = vsyncadd [#allocation3], 0
      %s23 = sshll.u32 %s1, 4
      %s24 = int_to_ptr.hbm [resolvable:$true] %s23
      %s25 = sshll.u32 [#allocation2], 4
      %s26 = int_to_ptr.vmem [resolvable:$true] %s25
      %31 = dma.hbm_to_vmem [thread:$0]  %s24, 24576, %s26, [#allocation3], 256, 256, 16
    $region9: #{ae_forward.1} parent=1 // pred_fallthru
      _
    // Predicated region
    $region10: #{ae_forward.1} parent=1 // pred_check
      _
    $region11: #{ae_forward.1} parent=1 // pred_check_branch
      %33 = sbr.rel (0) target = $region13
    $region12: #{ae_forward.1} parent=1 // pred_region
      %35 = vsyncadd [#allocation5], 0
      %s37 = sshll.u32 %s2, 4
      %s38 = int_to_ptr.hbm [resolvable:$true] %s37
      %s39 = sshll.u32 [#allocation4], 4
      %s40 = int_to_ptr.vmem [resolvable:$true] %s39
      %42 = dma.hbm_to_vmem [thread:$0]  %s38, 32, %s40, [#allocation5]
    $region13: #{ae_forward.1} parent=1 // pred_fallthru
      _
    // Predicated region
    $region14: #{ae_forward.1} parent=1 // pred_check
      _
    $region15: #{ae_forward.1} parent=1 // pred_check_branch
      %44 = sbr.rel (0) target = $region17
    $region16: #{ae_forward.1} parent=1 // pred_region
      _
    $region17: #{ae_forward.1} parent=1 // pred_fallthru
      _
    // Predicated region
    $region18: #{ae_forward.1} parent=1 // pred_check
      _
    $region19: #{ae_forward.1} parent=1 // pred_check_branch
      %46 = sbr.rel (0) target = $region21
    $region20: #{ae_forward.1} parent=1 // pred_region
      _
    $region21: #{ae_forward.1} parent=1 // pred_fallthru
      _
    // Predicated region
    $region22: #{ae_forward.1} parent=1 // pred_check
      _
    $region23: #{ae_forward.1} parent=1 // pred_check_branch
      %48 = sbr.rel (0) target = $region25
    $region24: #{ae_forward.1} parent=1 // pred_region
      %50 = vsyncadd [#allocation5], 0
      %s51 = sshll.u32 %s5, 4
      %s52 = int_to_ptr.hbm [resolvable:$true] %s51
      %s53 = sshll.u32 [#allocation6], 4
      %s54 = int_to_ptr.vmem [resolvable:$true] %s53
      %59 = dma.hbm_to_vmem [thread:$0]  %s52, 4096, %s54, [#allocation5], 256, 256, 16
    $region25: #{ae_forward.1} parent=1 // pred_fallthru
      _
    // Predicated region
    $region26: #{ae_forward.1} parent=1 // pred_check
      _
    $region27: #{ae_forward.1} parent=1 // pred_check_branch
      %61 = sbr.rel (0) target = $region29
    $region28: #{ae_forward.1} parent=1 // pred_region
      _
    $region29: #{ae_forward.1} parent=1 // pred_fallthru
      _
    // Predicated region
    $region30: #{ae_forward.1} parent=1 // pred_check
      _
    $region31: #{ae_forward.1} parent=1 // pred_check_branch
      %63 = sbr.rel (0) target = $region33
    $region32: #{ae_forward.1} parent=1 // pred_region
      %65 = vsyncadd [#allocation8], 0
      %s66 = sshll.u32 %s7, 4
      %s67 = int_to_ptr.hbm [resolvable:$true] %s66
      %s68 = sshll.u32 [#allocation7], 4
      %s69 = int_to_ptr.vmem [resolvable:$true] %s68
      %74 = dma.hbm_to_vmem [thread:$0]  %s67, 24576, %s69, [#allocation8], 768, 768, 48
    $region33: #{ae_forward.1} parent=1 // pred_fallthru
      _
    // Predicated region
    $region34: #{ae_forward.1} parent=1 // pred_check
      _
    $region35: #{ae_forward.1} parent=1 // pred_check_branch
      %76 = sbr.rel (0) target = $region37
    $region36: #{ae_forward.1} parent=1 // pred_region
      %78 = vsyncadd [#allocation8], 0
      %s80 = sshll.u32 %s8, 4
      %s81 = int_to_ptr.hbm [resolvable:$true] %s80
      %s82 = sshll.u32 [#allocation9], 4
      %s83 = int_to_ptr.vmem [resolvable:$true] %s82
      %85 = dma.hbm_to_vmem [thread:$0]  %s81, 96, %s83, [#allocation8]
    $region37: #{ae_forward.1} parent=1 // pred_fallthru
      _
    // Predicated region
    $region38: #{ae_forward.1} parent=1 // pred_check
      _
    $region39: #{ae_forward.1} parent=1 // pred_check_branch
      %87 = sbr.rel (0) target = $region41
    $region40: #{ae_forward.1} parent=1 // pred_region
      %89 = dma.done [#allocation3], 24576
    $region41: #{ae_forward.1} parent=1 // pred_fallthru
      _
    // Predicated region
    $region42: #{ae_forward.1} parent=1 // pred_check
      _
    $region43: #{ae_forward.1} parent=1 // pred_check_branch
      %91 = sbr.rel (0) target = $region45
    $region44: #{ae_forward.1} parent=1 // pred_region
      %93 = dma.done [#allocation5], 32
    $region45: #{ae_forward.1} parent=1 // pred_fallthru
      _
    // Predicated region
    $region46: #{ae_forward.1} parent=1 // pred_check
      _
    $region47: #{ae_forward.1} parent=1 // pred_check_branch
      %95 = sbr.rel (0) target = $region49
    $region48: #{ae_forward.1} parent=1 // pred_region
      %97 = dma.done [#allocation5], 4096
    $region49: #{ae_forward.1} parent=1 // pred_fallthru
      _
    // Predicated region
    $region50: #{ae_forward.1} parent=1 // pred_check
      _
    $region51: #{ae_forward.1} parent=1 // pred_check_branch
      %99 = sbr.rel (0) target = $region53
    $region52: #{ae_forward.1} parent=1 // pred_region
      %101 = dma.done [#allocation8], 24576
    $region53: #{ae_forward.1} parent=1 // pred_fallthru
      _
    // Predicated region
    $region54: #{ae_forward.1} parent=1 // pred_check
      _
    $region55: #{ae_forward.1} parent=1 // pred_check_branch
      %103 = sbr.rel (0) target = $region57
    $region56: #{ae_forward.1} parent=1 // pred_region
      %105 = dma.done [#allocation8], 96
    $region57: #{ae_forward.1} parent=1 // pred_fallthru
      _
    %v106 = vld [vmem:[%s0] sm:$0xff]
    %v107 = vld [vmem:[%s0 + $0x8] sm:$0xff]
    %v108 = vld [vmem:[%s0 + $0x10] sm:$0xff]
    %v109 = vld [vmem:[%s0 + $0x18] sm:$0xff]
    %v110 = vld [vmem:[%s0 + $0x20] sm:$0xff]
    %v111 = vld [vmem:[%s0 + $0x28] sm:$0xff]
    %v112 = vld [vmem:[#allocation2] sm:$0xff]
    %v113 = vld [vmem:[#allocation2 + $0x8] sm:$0xff]
    %v114 = vld [vmem:[#allocation2 + $0x10] sm:$0xff]
    %v115 = vld [vmem:[#allocation2 + $0x18] sm:$0xff]
    %v116 = vld [vmem:[#allocation2 + $0x20] sm:$0xff]
    %v117 = vld [vmem:[#allocation2 + $0x28] sm:$0xff]
    %v118 = vld [vmem:[#allocation2 + $0x30] sm:$0xff]
    %v119 = vld [vmem:[#allocation2 + $0x38] sm:$0xff]
    %v120 = vld [vmem:[#allocation2 + $0x40] sm:$0xff]
    %v121 = vld [vmem:[#allocation2 + $0x48] sm:$0xff]
    %v122 = vld [vmem:[#allocation2 + $0x50] sm:$0xff]
    %v123 = vld [vmem:[#allocation2 + $0x58] sm:$0xff]
    %v124 = vld [vmem:[#allocation2 + $0x60] sm:$0xff]
    %v125 = vld [vmem:[#allocation2 + $0x68] sm:$0xff]
    %v126 = vld [vmem:[#allocation2 + $0x70] sm:$0xff]
    %v127 = vld [vmem:[#allocation2 + $0x78] sm:$0xff]
    %v128 = vld [vmem:[#allocation2 + $0x80] sm:$0xff]
    %v129 = vld [vmem:[#allocation2 + $0x88] sm:$0xff]
    %v130 = vld [vmem:[#allocation2 + $0x90] sm:$0xff]
    %v131 = vld [vmem:[#allocation2 + $0x98] sm:$0xff]
    %v132 = vld [vmem:[#allocation2 + $0xa0] sm:$0xff]
    %v133 = vld [vmem:[#allocation2 + $0xa8] sm:$0xff]
    %v134 = vld [vmem:[#allocation2 + $0xb0] sm:$0xff]
    %v135 = vld [vmem:[#allocation2 + $0xb8] sm:$0xff]
    %v136 = vld [vmem:[#allocation2 + $0xc0] sm:$0xff]
    %v137 = vld [vmem:[#allocation2 + $0xc8] sm:$0xff]
    %v138 = vld [vmem:[#allocation2 + $0xd0] sm:$0xff]
    %v139 = vld [vmem:[#allocation2 + $0xd8] sm:$0xff]
    %v140 = vld [vmem:[#allocation2 + $0xe0] sm:$0xff]
    %v141 = vld [vmem:[#allocation2 + $0xe8] sm:$0xff]
    %v142 = vld [vmem:[#allocation2 + $0xf0] sm:$0xff]
    %v143 = vld [vmem:[#allocation2 + $0xf8] sm:$0xff]
    %v144 = vld [vmem:[#allocation2 + $0x100] sm:$0xff]
    %v145 = vld [vmem:[#allocation2 + $0x108] sm:$0xff]
    %v146 = vld [vmem:[#allocation2 + $0x110] sm:$0xff]
    %v147 = vld [vmem:[#allocation2 + $0x118] sm:$0xff]
    %v148 = vld [vmem:[#allocation2 + $0x120] sm:$0xff]
    %v149 = vld [vmem:[#allocation2 + $0x128] sm:$0xff]
    %v150 = vld [vmem:[#allocation2 + $0x130] sm:$0xff]
    %v151 = vld [vmem:[#allocation2 + $0x138] sm:$0xff]
    %v152 = vld [vmem:[#allocation2 + $0x140] sm:$0xff]
    %v153 = vld [vmem:[#allocation2 + $0x148] sm:$0xff]
    %v154 = vld [vmem:[#allocation2 + $0x150] sm:$0xff]
    %v155 = vld [vmem:[#allocation2 + $0x158] sm:$0xff]
    %v156 = vld [vmem:[#allocation2 + $0x160] sm:$0xff]
    %v157 = vld [vmem:[#allocation2 + $0x168] sm:$0xff]
    %v158 = vld [vmem:[#allocation2 + $0x170] sm:$0xff]
    %v159 = vld [vmem:[#allocation2 + $0x178] sm:$0xff]
    %v160 = vld [vmem:[#allocation2 + $0x180] sm:$0xff]
    %v161 = vld [vmem:[#allocation2 + $0x188] sm:$0xff]
    %v162 = vld [vmem:[#allocation2 + $0x190] sm:$0xff]
    %v163 = vld [vmem:[#allocation2 + $0x198] sm:$0xff]
    %v164 = vld [vmem:[#allocation2 + $0x1a0] sm:$0xff]
    %v165 = vld [vmem:[#allocation2 + $0x1a8] sm:$0xff]
    %v166 = vld [vmem:[#allocation2 + $0x1b0] sm:$0xff]
    %v167 = vld [vmem:[#allocation2 + $0x1b8] sm:$0xff]
    %v168 = vld [vmem:[#allocation2 + $0x1c0] sm:$0xff]
    %v169 = vld [vmem:[#allocation2 + $0x1c8] sm:$0xff]
    %v170 = vld [vmem:[#allocation2 + $0x1d0] sm:$0xff]
    %v171 = vld [vmem:[#allocation2 + $0x1d8] sm:$0xff]
    %v172 = vld [vmem:[#allocation2 + $0x1e0] sm:$0xff]
    %v173 = vld [vmem:[#allocation2 + $0x1e8] sm:$0xff]
    %v174 = vld [vmem:[#allocation2 + $0x1f0] sm:$0xff]
    %v175 = vld [vmem:[#allocation2 + $0x1f8] sm:$0xff]
    %v176 = vld [vmem:[#allocation2 + $0x200] sm:$0xff]
    %v177 = vld [vmem:[#allocation2 + $0x208] sm:$0xff]
    %v178 = vld [vmem:[#allocation2 + $0x210] sm:$0xff]
    %v179 = vld [vmem:[#allocation2 + $0x218] sm:$0xff]
    %v180 = vld [vmem:[#allocation2 + $0x220] sm:$0xff]
    %v181 = vld [vmem:[#allocation2 + $0x228] sm:$0xff]
    %v182 = vld [vmem:[#allocation2 + $0x230] sm:$0xff]
    %v183 = vld [vmem:[#allocation2 + $0x238] sm:$0xff]
    %v184 = vld [vmem:[#allocation2 + $0x240] sm:$0xff]
    %v185 = vld [vmem:[#allocation2 + $0x248] sm:$0xff]
    %v186 = vld [vmem:[#allocation2 + $0x250] sm:$0xff]
    %v187 = vld [vmem:[#allocation2 + $0x258] sm:$0xff]
    %v188 = vld [vmem:[#allocation2 + $0x260] sm:$0xff]
    %v189 = vld [vmem:[#allocation2 + $0x268] sm:$0xff]
    %v190 = vld [vmem:[#allocation2 + $0x270] sm:$0xff]
    %v191 = vld [vmem:[#allocation2 + $0x278] sm:$0xff]
    %v192 = vld [vmem:[#allocation2 + $0x280] sm:$0xff]
    %v193 = vld [vmem:[#allocation2 + $0x288] sm:$0xff]
    %v194 = vld [vmem:[#allocation2 + $0x290] sm:$0xff]
    %v195 = vld [vmem:[#allocation2 + $0x298] sm:$0xff]
    %v196 = vld [vmem:[#allocation2 + $0x2a0] sm:$0xff]
    %v197 = vld [vmem:[#allocation2 + $0x2a8] sm:$0xff]
    %v198 = vld [vmem:[#allocation2 + $0x2b0] sm:$0xff]
    %v199 = vld [vmem:[#allocation2 + $0x2b8] sm:$0xff]
    %v200 = vld [vmem:[#allocation2 + $0x2c0] sm:$0xff]
    %v201 = vld [vmem:[#allocation2 + $0x2c8] sm:$0xff]
    %v202 = vld [vmem:[#allocation2 + $0x2d0] sm:$0xff]
    %v203 = vld [vmem:[#allocation2 + $0x2d8] sm:$0xff]
    %v204 = vld [vmem:[#allocation2 + $0x2e0] sm:$0xff]
    %v205 = vld [vmem:[#allocation2 + $0x2e8] sm:$0xff]
    %v206 = vld [vmem:[#allocation2 + $0x2f0] sm:$0xff]
    %v207 = vld [vmem:[#allocation2 + $0x2f8] sm:$0xff]
    %v208 = vld [vmem:[#allocation2 + $0x300] sm:$0xff]
    %v209 = vld [vmem:[#allocation2 + $0x308] sm:$0xff]
    %v210 = vld [vmem:[#allocation2 + $0x310] sm:$0xff]
    %v211 = vld [vmem:[#allocation2 + $0x318] sm:$0xff]
    %v212 = vld [vmem:[#allocation2 + $0x320] sm:$0xff]
    %v213 = vld [vmem:[#allocation2 + $0x328] sm:$0xff]
    %v214 = vld [vmem:[#allocation2 + $0x330] sm:$0xff]
    %v215 = vld [vmem:[#allocation2 + $0x338] sm:$0xff]
    %v216 = vld [vmem:[#allocation2 + $0x340] sm:$0xff]
    %v217 = vld [vmem:[#allocation2 + $0x348] sm:$0xff]
    %v218 = vld [vmem:[#allocation2 + $0x350] sm:$0xff]
    %v219 = vld [vmem:[#allocation2 + $0x358] sm:$0xff]
    %v220 = vld [vmem:[#allocation2 + $0x360] sm:$0xff]
    %v221 = vld [vmem:[#allocation2 + $0x368] sm:$0xff]
    %v222 = vld [vmem:[#allocation2 + $0x370] sm:$0xff]
    %v223 = vld [vmem:[#allocation2 + $0x378] sm:$0xff]
    %v224 = vld [vmem:[#allocation2 + $0x380] sm:$0xff]
    %v225 = vld [vmem:[#allocation2 + $0x388] sm:$0xff]
    %v226 = vld [vmem:[#allocation2 + $0x390] sm:$0xff]
    %v227 = vld [vmem:[#allocation2 + $0x398] sm:$0xff]
    %v228 = vld [vmem:[#allocation2 + $0x3a0] sm:$0xff]
    %v229 = vld [vmem:[#allocation2 + $0x3a8] sm:$0xff]
    %v230 = vld [vmem:[#allocation2 + $0x3b0] sm:$0xff]
    %v231 = vld [vmem:[#allocation2 + $0x3b8] sm:$0xff]
    %v232 = vld [vmem:[#allocation2 + $0x3c0] sm:$0xff]
    %v233 = vld [vmem:[#allocation2 + $0x3c8] sm:$0xff]
    %v234 = vld [vmem:[#allocation2 + $0x3d0] sm:$0xff]
    %v235 = vld [vmem:[#allocation2 + $0x3d8] sm:$0xff]
    %v236 = vld [vmem:[#allocation2 + $0x3e0] sm:$0xff]
    %v237 = vld [vmem:[#allocation2 + $0x3e8] sm:$0xff]
    %v238 = vld [vmem:[#allocation2 + $0x3f0] sm:$0xff]
    %v239 = vld [vmem:[#allocation2 + $0x3f8] sm:$0xff]
    %v240 = vld [vmem:[#allocation2 + $0x400] sm:$0xff]
    %v241 = vld [vmem:[#allocation2 + $0x408] sm:$0xff]
    %v242 = vld [vmem:[#allocation2 + $0x410] sm:$0xff]
    %v243 = vld [vmem:[#allocation2 + $0x418] sm:$0xff]
    %v244 = vld [vmem:[#allocation2 + $0x420] sm:$0xff]
    %v245 = vld [vmem:[#allocation2 + $0x428] sm:$0xff]
    %v246 = vld [vmem:[#allocation2 + $0x430] sm:$0xff]
    %v247 = vld [vmem:[#allocation2 + $0x438] sm:$0xff]
    %v248 = vld [vmem:[#allocation2 + $0x440] sm:$0xff]
    %v249 = vld [vmem:[#allocation2 + $0x448] sm:$0xff]
    %v250 = vld [vmem:[#allocation2 + $0x450] sm:$0xff]
    %v251 = vld [vmem:[#allocation2 + $0x458] sm:$0xff]
    %v252 = vld [vmem:[#allocation2 + $0x460] sm:$0xff]
    %v253 = vld [vmem:[#allocation2 + $0x468] sm:$0xff]
    %v254 = vld [vmem:[#allocation2 + $0x470] sm:$0xff]
    %v255 = vld [vmem:[#allocation2 + $0x478] sm:$0xff]
    %v256 = vld [vmem:[#allocation2 + $0x480] sm:$0xff]
    %v257 = vld [vmem:[#allocation2 + $0x488] sm:$0xff]
    %v258 = vld [vmem:[#allocation2 + $0x490] sm:$0xff]
    %v259 = vld [vmem:[#allocation2 + $0x498] sm:$0xff]
    %v260 = vld [vmem:[#allocation2 + $0x4a0] sm:$0xff]
    %v261 = vld [vmem:[#allocation2 + $0x4a8] sm:$0xff]
    %v262 = vld [vmem:[#allocation2 + $0x4b0] sm:$0xff]
    %v263 = vld [vmem:[#allocation2 + $0x4b8] sm:$0xff]
    %v264 = vld [vmem:[#allocation2 + $0x4c0] sm:$0xff]
    %v265 = vld [vmem:[#allocation2 + $0x4c8] sm:$0xff]
    %v266 = vld [vmem:[#allocation2 + $0x4d0] sm:$0xff]
    %v267 = vld [vmem:[#allocation2 + $0x4d8] sm:$0xff]
    %v268 = vld [vmem:[#allocation2 + $0x4e0] sm:$0xff]
    %v269 = vld [vmem:[#allocation2 + $0x4e8] sm:$0xff]
    %v270 = vld [vmem:[#allocation2 + $0x4f0] sm:$0xff]
    %v271 = vld [vmem:[#allocation2 + $0x4f8] sm:$0xff]
    %v272 = vld [vmem:[#allocation2 + $0x500] sm:$0xff]
    %v273 = vld [vmem:[#allocation2 + $0x508] sm:$0xff]
    %v274 = vld [vmem:[#allocation2 + $0x510] sm:$0xff]
    %v275 = vld [vmem:[#allocation2 + $0x518] sm:$0xff]
    %v276 = vld [vmem:[#allocation2 + $0x520] sm:$0xff]
    %v277 = vld [vmem:[#allocation2 + $0x528] sm:$0xff]
    %v278 = vld [vmem:[#allocation2 + $0x530] sm:$0xff]
    %v279 = vld [vmem:[#allocation2 + $0x538] sm:$0xff]
    %v280 = vld [vmem:[#allocation2 + $0x540] sm:$0xff]
    %v281 = vld [vmem:[#allocation2 + $0x548] sm:$0xff]
    %v282 = vld [vmem:[#allocation2 + $0x550] sm:$0xff]
    %v283 = vld [vmem:[#allocation2 + $0x558] sm:$0xff]
    %v284 = vld [vmem:[#allocation2 + $0x560] sm:$0xff]
    %v285 = vld [vmem:[#allocation2 + $0x568] sm:$0xff]
    %v286 = vld [vmem:[#allocation2 + $0x570] sm:$0xff]
    %v287 = vld [vmem:[#allocation2 + $0x578] sm:$0xff]
    %v288 = vld [vmem:[#allocation2 + $0x580] sm:$0xff]
    %v289 = vld [vmem:[#allocation2 + $0x588] sm:$0xff]
    %v290 = vld [vmem:[#allocation2 + $0x590] sm:$0xff]
    %v291 = vld [vmem:[#allocation2 + $0x598] sm:$0xff]
    %v292 = vld [vmem:[#allocation2 + $0x5a0] sm:$0xff]
    %v293 = vld [vmem:[#allocation2 + $0x5a8] sm:$0xff]
    %v294 = vld [vmem:[#allocation2 + $0x5b0] sm:$0xff]
    %v295 = vld [vmem:[#allocation2 + $0x5b8] sm:$0xff]
    %v296 = vld [vmem:[#allocation2 + $0x5c0] sm:$0xff]
    %v297 = vld [vmem:[#allocation2 + $0x5c8] sm:$0xff]
    %v298 = vld [vmem:[#allocation2 + $0x5d0] sm:$0xff]
    %v299 = vld [vmem:[#allocation2 + $0x5d8] sm:$0xff]
    %v300 = vld [vmem:[#allocation2 + $0x5e0] sm:$0xff]
    %v301 = vld [vmem:[#allocation2 + $0x5e8] sm:$0xff]
    %v302 = vld [vmem:[#allocation2 + $0x5f0] sm:$0xff]
    %v303 = vld [vmem:[#allocation2 + $0x5f8] sm:$0xff]
    %v304 = vld [vmem:[#allocation4] sm:$0x3]
    %v306 = vperm.slane %v304, 0
    %v307 = vperm.slane %v304, 1
    %310 = vmatpush.msra.mxu0 %v142
    %311 = vmatpush.msra.mxu0 %v140
    %312 = vmatpush.msra.mxu0 %v138
    %313 = vmatpush.msra.mxu0 %v136
    %314 = vmatpush.msra.mxu0 %v134
    %315 = vmatpush.msra.mxu0 %v132
    %316 = vmatpush.msra.mxu0 %v130
    %317 = vmatpush.msra.mxu0 %v128
    %318 = vmatpush.msra.mxu0 %v126
    %319 = vmatpush.msra.mxu0 %v124
    %320 = vmatpush.msra.mxu0 %v122
    %321 = vmatpush.msra.mxu0 %v120
    %322 = vmatpush.msra.mxu0 %v118
    %323 = vmatpush.msra.mxu0 %v116
    %324 = vmatpush.msra.mxu0 %v114
    %325 = vmatpush.msra.mxu0 %v112
    %326 = vmatmul.f32.gmra.mxu0 %v106
    %v327 = vpop.f32.mrf.mxu0
    %v328 = vadd.f32 %v306, %v327
    %329 = vdwg.mxu0
    %330 = vmatpush.msra.mxu0 %v174
    %331 = vmatpush.msra.mxu0 %v172
    %332 = vmatpush.msra.mxu0 %v170
    %333 = vmatpush.msra.mxu0 %v168
    %334 = vmatpush.msra.mxu0 %v166
    %335 = vmatpush.msra.mxu0 %v164
    %336 = vmatpush.msra.mxu0 %v162
    %337 = vmatpush.msra.mxu0 %v160
    %338 = vmatpush.msra.mxu0 %v158
    %339 = vmatpush.msra.mxu0 %v156
    %340 = vmatpush.msra.mxu0 %v154
    %341 = vmatpush.msra.mxu0 %v152
    %342 = vmatpush.msra.mxu0 %v150
    %343 = vmatpush.msra.mxu0 %v148
    %344 = vmatpush.msra.mxu0 %v146
    %345 = vmatpush.msra.mxu0 %v144
    %346 = vmatmul.f32.gmra.mxu0 %v107
    %v347 = vpop.f32.mrf.mxu0
    %v348 = vadd.f32 %v328, %v347
    %349 = vdwg.mxu0
    %350 = vmatpush.msra.mxu0 %v206
    %351 = vmatpush.msra.mxu0 %v204
    %352 = vmatpush.msra.mxu0 %v202
    %353 = vmatpush.msra.mxu0 %v200
    %354 = vmatpush.msra.mxu0 %v198
    %355 = vmatpush.msra.mxu0 %v196
    %356 = vmatpush.msra.mxu0 %v194
    %357 = vmatpush.msra.mxu0 %v192
    %358 = vmatpush.msra.mxu0 %v190
    %359 = vmatpush.msra.mxu0 %v188
    %360 = vmatpush.msra.mxu0 %v186
    %361 = vmatpush.msra.mxu0 %v184
    %362 = vmatpush.msra.mxu0 %v182
    %363 = vmatpush.msra.mxu0 %v180
    %364 = vmatpush.msra.mxu0 %v178
    %365 = vmatpush.msra.mxu0 %v176
    %366 = vmatmul.f32.gmra.mxu0 %v108
    %v367 = vpop.f32.mrf.mxu0
    %v368 = vadd.f32 %v348, %v367
    %369 = vdwg.mxu0
    %370 = vmatpush.msra.mxu0 %v238
    %371 = vmatpush.msra.mxu0 %v236
    %372 = vmatpush.msra.mxu0 %v234
    %373 = vmatpush.msra.mxu0 %v232
    %374 = vmatpush.msra.mxu0 %v230
    %375 = vmatpush.msra.mxu0 %v228
    %376 = vmatpush.msra.mxu0 %v226
    %377 = vmatpush.msra.mxu0 %v224
    %378 = vmatpush.msra.mxu0 %v222
    %379 = vmatpush.msra.mxu0 %v220
    %380 = vmatpush.msra.mxu0 %v218
    %381 = vmatpush.msra.mxu0 %v216
    %382 = vmatpush.msra.mxu0 %v214
    %383 = vmatpush.msra.mxu0 %v212
    %384 = vmatpush.msra.mxu0 %v210
    %385 = vmatpush.msra.mxu0 %v208
    %386 = vmatmul.f32.gmra.mxu0 %v109
    %v387 = vpop.f32.mrf.mxu0
    %v388 = vadd.f32 %v368, %v387
    %389 = vdwg.mxu0
    %390 = vmatpush.msra.mxu0 %v270
    %391 = vmatpush.msra.mxu0 %v268
    %392 = vmatpush.msra.mxu0 %v266
    %393 = vmatpush.msra.mxu0 %v264
    %394 = vmatpush.msra.mxu0 %v262
    %395 = vmatpush.msra.mxu0 %v260
    %396 = vmatpush.msra.mxu0 %v258
    %397 = vmatpush.msra.mxu0 %v256
    %398 = vmatpush.msra.mxu0 %v254
    %399 = vmatpush.msra.mxu0 %v252
    %400 = vmatpush.msra.mxu0 %v250
    %401 = vmatpush.msra.mxu0 %v248
    %402 = vmatpush.msra.mxu0 %v246
    %403 = vmatpush.msra.mxu0 %v244
    %404 = vmatpush.msra.mxu0 %v242
    %405 = vmatpush.msra.mxu0 %v240
    %406 = vmatmul.f32.gmra.mxu0 %v110
    %v407 = vpop.f32.mrf.mxu0
    %v408 = vadd.f32 %v388, %v407
    %409 = vdwg.mxu0
    %410 = vmatpush.msra.mxu0 %v302
    %411 = vmatpush.msra.mxu0 %v300
    %412 = vmatpush.msra.mxu0 %v298
    %413 = vmatpush.msra.mxu0 %v296
    %414 = vmatpush.msra.mxu0 %v294
    %415 = vmatpush.msra.mxu0 %v292
    %416 = vmatpush.msra.mxu0 %v290
    %417 = vmatpush.msra.mxu0 %v288
    %418 = vmatpush.msra.mxu0 %v286
    %419 = vmatpush.msra.mxu0 %v284
    %420 = vmatpush.msra.mxu0 %v282
    %421 = vmatpush.msra.mxu0 %v280
    %422 = vmatpush.msra.mxu0 %v278
    %423 = vmatpush.msra.mxu0 %v276
    %424 = vmatpush.msra.mxu0 %v274
    %425 = vmatpush.msra.mxu0 %v272
    %426 = vmatmul.f32.gmra.mxu0 %v111
    %v427 = vpop.f32.mrf.mxu0
    %v428 = vadd.f32 %v408, %v427
    %429 = vdwg.mxu0
    %430 = vmatpush.msra.mxu0 %v143
    %431 = vmatpush.msra.mxu0 %v141
    %432 = vmatpush.msra.mxu0 %v139
    %433 = vmatpush.msra.mxu0 %v137
    %434 = vmatpush.msra.mxu0 %v135
    %435 = vmatpush.msra.mxu0 %v133
    %436 = vmatpush.msra.mxu0 %v131
    %437 = vmatpush.msra.mxu0 %v129
    %438 = vmatpush.msra.mxu0 %v127
    %439 = vmatpush.msra.mxu0 %v125
    %440 = vmatpush.msra.mxu0 %v123
    %441 = vmatpush.msra.mxu0 %v121
    %442 = vmatpush.msra.mxu0 %v119
    %443 = vmatpush.msra.mxu0 %v117
    %444 = vmatpush.msra.mxu0 %v115
    %445 = vmatpush.msra.mxu0 %v113
    %446 = vmatmul.f32.gmra.mxu0 %v106
    %v447 = vpop.f32.mrf.mxu0
    %v448 = vadd.f32 %v307, %v447
    %449 = vdwg.mxu0
    %450 = vmatpush.msra.mxu0 %v175
    %451 = vmatpush.msra.mxu0 %v173
    %452 = vmatpush.msra.mxu0 %v171
    %453 = vmatpush.msra.mxu0 %v169
    %454 = vmatpush.msra.mxu0 %v167
    %455 = vmatpush.msra.mxu0 %v165
    %456 = vmatpush.msra.mxu0 %v163
    %457 = vmatpush.msra.mxu0 %v161
    %458 = vmatpush.msra.mxu0 %v159
    %459 = vmatpush.msra.mxu0 %v157
    %460 = vmatpush.msra.mxu0 %v155
    %461 = vmatpush.msra.mxu0 %v153
    %462 = vmatpush.msra.mxu0 %v151
    %463 = vmatpush.msra.mxu0 %v149
    %464 = vmatpush.msra.mxu0 %v147
    %465 = vmatpush.msra.mxu0 %v145
    %466 = vmatmul.f32.gmra.mxu0 %v107
    %v467 = vpop.f32.mrf.mxu0
    %v468 = vadd.f32 %v448, %v467
    %469 = vdwg.mxu0
    %470 = vmatpush.msra.mxu0 %v207
    %471 = vmatpush.msra.mxu0 %v205
    %472 = vmatpush.msra.mxu0 %v203
    %473 = vmatpush.msra.mxu0 %v201
    %474 = vmatpush.msra.mxu0 %v199
    %475 = vmatpush.msra.mxu0 %v197
    %476 = vmatpush.msra.mxu0 %v195
    %477 = vmatpush.msra.mxu0 %v193
    %478 = vmatpush.msra.mxu0 %v191
    %479 = vmatpush.msra.mxu0 %v189
    %480 = vmatpush.msra.mxu0 %v187
    %481 = vmatpush.msra.mxu0 %v185
    %482 = vmatpush.msra.mxu0 %v183
    %483 = vmatpush.msra.mxu0 %v181
    %484 = vmatpush.msra.mxu0 %v179
    %485 = vmatpush.msra.mxu0 %v177
    %486 = vmatmul.f32.gmra.mxu0 %v108
    %v487 = vpop.f32.mrf.mxu0
    %v488 = vadd.f32 %v468, %v487
    %489 = vdwg.mxu0
    %490 = vmatpush.msra.mxu0 %v239
    %491 = vmatpush.msra.mxu0 %v237
    %492 = vmatpush.msra.mxu0 %v235
    %493 = vmatpush.msra.mxu0 %v233
    %494 = vmatpush.msra.mxu0 %v231
    %495 = vmatpush.msra.mxu0 %v229
    %496 = vmatpush.msra.mxu0 %v227
    %497 = vmatpush.msra.mxu0 %v225
    %498 = vmatpush.msra.mxu0 %v223
    %499 = vmatpush.msra.mxu0 %v221
    %500 = vmatpush.msra.mxu0 %v219
    %501 = vmatpush.msra.mxu0 %v217
    %502 = vmatpush.msra.mxu0 %v215
    %503 = vmatpush.msra.mxu0 %v213
    %504 = vmatpush.msra.mxu0 %v211
    %505 = vmatpush.msra.mxu0 %v209
    %506 = vmatmul.f32.gmra.mxu0 %v109
    %v507 = vpop.f32.mrf.mxu0
    %v508 = vadd.f32 %v488, %v507
    %509 = vdwg.mxu0
    %510 = vmatpush.msra.mxu0 %v271
    %511 = vmatpush.msra.mxu0 %v269
    %512 = vmatpush.msra.mxu0 %v267
    %513 = vmatpush.msra.mxu0 %v265
    %514 = vmatpush.msra.mxu0 %v263
    %515 = vmatpush.msra.mxu0 %v261
    %516 = vmatpush.msra.mxu0 %v259
    %517 = vmatpush.msra.mxu0 %v257
    %518 = vmatpush.msra.mxu0 %v255
    %519 = vmatpush.msra.mxu0 %v253
    %520 = vmatpush.msra.mxu0 %v251
    %521 = vmatpush.msra.mxu0 %v249
    %522 = vmatpush.msra.mxu0 %v247
    %523 = vmatpush.msra.mxu0 %v245
    %524 = vmatpush.msra.mxu0 %v243
    %525 = vmatpush.msra.mxu0 %v241
    %526 = vmatmul.f32.gmra.mxu0 %v110
    %v527 = vpop.f32.mrf.mxu0
    %v528 = vadd.f32 %v508, %v527
    %529 = vdwg.mxu0
    %530 = vmatpush.msra.mxu0 %v303
    %531 = vmatpush.msra.mxu0 %v301
    %532 = vmatpush.msra.mxu0 %v299
    %533 = vmatpush.msra.mxu0 %v297
    %534 = vmatpush.msra.mxu0 %v295
    %535 = vmatpush.msra.mxu0 %v293
    %536 = vmatpush.msra.mxu0 %v291
    %537 = vmatpush.msra.mxu0 %v289
    %538 = vmatpush.msra.mxu0 %v287
    %539 = vmatpush.msra.mxu0 %v285
    %540 = vmatpush.msra.mxu0 %v283
    %541 = vmatpush.msra.mxu0 %v281
    %542 = vmatpush.msra.mxu0 %v279
    %543 = vmatpush.msra.mxu0 %v277
    %544 = vmatpush.msra.mxu0 %v275
    %545 = vmatpush.msra.mxu0 %v273
    %546 = vmatmul.f32.gmra.mxu0 %v111
    %v547 = vpop.f32.mrf.mxu0
    %v548 = vadd.f32 %v528, %v547
    %549 = vdwg.mxu0
    %v550 = vmax.f32 %v428, 0.0
    %v551 = vmax.f32 %v548, 0.0
    %v552 = vld [vmem:[%s3] sm:$0xff]
    %v553 = vld [vmem:[%s3 + $0x8] sm:$0xff]
    %v554 = vld [vmem:[%s3 + $0x10] sm:$0xff]
    %v555 = vld [vmem:[%s3 + $0x18] sm:$0xff]
    %v556 = vld [vmem:[%s3 + $0x20] sm:$0xff]
    %v557 = vld [vmem:[%s3 + $0x28] sm:$0xff]
    %v558 = vld [vmem:[%s3 + $0x30] sm:$0xff]
    %v559 = vld [vmem:[%s3 + $0x38] sm:$0xff]
    %v560 = vld [vmem:[%s3 + $0x40] sm:$0xff]
    %v561 = vld [vmem:[%s3 + $0x48] sm:$0xff]
    %v562 = vld [vmem:[%s3 + $0x50] sm:$0xff]
    %v563 = vld [vmem:[%s3 + $0x58] sm:$0xff]
    %v564 = vld [vmem:[%s3 + $0x60] sm:$0xff]
    %v565 = vld [vmem:[%s3 + $0x68] sm:$0xff]
    %v566 = vld [vmem:[%s3 + $0x70] sm:$0xff]
    %v567 = vld [vmem:[%s3 + $0x78] sm:$0xff]
    %v568 = vld [vmem:[%s3 + $0x80] sm:$0xff]
    %v569 = vld [vmem:[%s3 + $0x88] sm:$0xff]
    %v570 = vld [vmem:[%s3 + $0x90] sm:$0xff]
    %v571 = vld [vmem:[%s3 + $0x98] sm:$0xff]
    %v572 = vld [vmem:[%s3 + $0xa0] sm:$0xff]
    %v573 = vld [vmem:[%s3 + $0xa8] sm:$0xff]
    %v574 = vld [vmem:[%s3 + $0xb0] sm:$0xff]
    %v575 = vld [vmem:[%s3 + $0xb8] sm:$0xff]
    %v576 = vld [vmem:[%s3 + $0xc0] sm:$0xff]
    %v577 = vld [vmem:[%s3 + $0xc8] sm:$0xff]
    %v578 = vld [vmem:[%s3 + $0xd0] sm:$0xff]
    %v579 = vld [vmem:[%s3 + $0xd8] sm:$0xff]
    %v580 = vld [vmem:[%s3 + $0xe0] sm:$0xff]
    %v581 = vld [vmem:[%s3 + $0xe8] sm:$0xff]
    %v582 = vld [vmem:[%s3 + $0xf0] sm:$0xff]
    %v583 = vld [vmem:[%s3 + $0xf8] sm:$0xff]
    %v584 = vld [vmem:[%s4] sm:$0x1]
    %v586 = vperm.slane %v584, 0
    %588 = vmatpush.msra.mxu0 %v567
    %589 = vmatpush.msra.mxu0 %v566
    %590 = vmatpush.msra.mxu0 %v565
    %591 = vmatpush.msra.mxu0 %v564
    %592 = vmatpush.msra.mxu0 %v563
    %593 = vmatpush.msra.mxu0 %v562
    %594 = vmatpush.msra.mxu0 %v561
    %595 = vmatpush.msra.mxu0 %v560
    %596 = vmatpush.msra.mxu0 %v559
    %597 = vmatpush.msra.mxu0 %v558
    %598 = vmatpush.msra.mxu0 %v557
    %599 = vmatpush.msra.mxu0 %v556
    %600 = vmatpush.msra.mxu0 %v555
    %601 = vmatpush.msra.mxu0 %v554
    %602 = vmatpush.msra.mxu0 %v553
    %603 = vmatpush.msra.mxu0 %v552
    %604 = vmatmul.f32.gmra.mxu0 %v550
    %v605 = vpop.f32.mrf.mxu0
    %v606 = vadd.f32 %v586, %v605
    %607 = vdwg.mxu0
    %608 = vmatpush.msra.mxu0 %v583
    %609 = vmatpush.msra.mxu0 %v582
    %610 = vmatpush.msra.mxu0 %v581
    %611 = vmatpush.msra.mxu0 %v580
    %612 = vmatpush.msra.mxu0 %v579
    %613 = vmatpush.msra.mxu0 %v578
    %614 = vmatpush.msra.mxu0 %v577
    %615 = vmatpush.msra.mxu0 %v576
    %616 = vmatpush.msra.mxu0 %v575
    %617 = vmatpush.msra.mxu0 %v574
    %618 = vmatpush.msra.mxu0 %v573
    %619 = vmatpush.msra.mxu0 %v572
    %620 = vmatpush.msra.mxu0 %v571
    %621 = vmatpush.msra.mxu0 %v570
    %622 = vmatpush.msra.mxu0 %v569
    %623 = vmatpush.msra.mxu0 %v568
    %624 = vmatmul.f32.gmra.mxu0 %v551
    %v625 = vpop.f32.mrf.mxu0
    %v626 = vadd.f32 %v606, %v625
    %627 = vdwg.mxu0
    %v628 = vld [vmem:[#allocation6] sm:$0xff]
    %v629 = vld [vmem:[#allocation6 + $0x8] sm:$0xff]
    %v630 = vld [vmem:[#allocation6 + $0x10] sm:$0xff]
    %v631 = vld [vmem:[#allocation6 + $0x18] sm:$0xff]
    %v632 = vld [vmem:[#allocation6 + $0x20] sm:$0xff]
    %v633 = vld [vmem:[#allocation6 + $0x28] sm:$0xff]
    %v634 = vld [vmem:[#allocation6 + $0x30] sm:$0xff]
    %v635 = vld [vmem:[#allocation6 + $0x38] sm:$0xff]
    %v636 = vld [vmem:[#allocation6 + $0x40] sm:$0xff]
    %v637 = vld [vmem:[#allocation6 + $0x48] sm:$0xff]
    %v638 = vld [vmem:[#allocation6 + $0x50] sm:$0xff]
    %v639 = vld [vmem:[#allocation6 + $0x58] sm:$0xff]
    %v640 = vld [vmem:[#allocation6 + $0x60] sm:$0xff]
    %v641 = vld [vmem:[#allocation6 + $0x68] sm:$0xff]
    %v642 = vld [vmem:[#allocation6 + $0x70] sm:$0xff]
    %v643 = vld [vmem:[#allocation6 + $0x78] sm:$0xff]
    %v644 = vld [vmem:[#allocation6 + $0x80] sm:$0xff]
    %v645 = vld [vmem:[#allocation6 + $0x88] sm:$0xff]
    %v646 = vld [vmem:[#allocation6 + $0x90] sm:$0xff]
    %v647 = vld [vmem:[#allocation6 + $0x98] sm:$0xff]
    %v648 = vld [vmem:[#allocation6 + $0xa0] sm:$0xff]
    %v649 = vld [vmem:[#allocation6 + $0xa8] sm:$0xff]
    %v650 = vld [vmem:[#allocation6 + $0xb0] sm:$0xff]
    %v651 = vld [vmem:[#allocation6 + $0xb8] sm:$0xff]
    %v652 = vld [vmem:[#allocation6 + $0xc0] sm:$0xff]
    %v653 = vld [vmem:[#allocation6 + $0xc8] sm:$0xff]
    %v654 = vld [vmem:[#allocation6 + $0xd0] sm:$0xff]
    %v655 = vld [vmem:[#allocation6 + $0xd8] sm:$0xff]
    %v656 = vld [vmem:[#allocation6 + $0xe0] sm:$0xff]
    %v657 = vld [vmem:[#allocation6 + $0xe8] sm:$0xff]
    %v658 = vld [vmem:[#allocation6 + $0xf0] sm:$0xff]
    %v659 = vld [vmem:[#allocation6 + $0xf8] sm:$0xff]
    %v660 = vld [vmem:[%s6] sm:$0x3]
    %v662 = vperm.slane %v660, 0
    %v663 = vperm.slane %v660, 1
    %666 = vmatpush.msra.mxu0 %v658
    %667 = vmatpush.msra.mxu0 %v656
    %668 = vmatpush.msra.mxu0 %v654
    %669 = vmatpush.msra.mxu0 %v652
    %670 = vmatpush.msra.mxu0 %v650
    %671 = vmatpush.msra.mxu0 %v648
    %672 = vmatpush.msra.mxu0 %v646
    %673 = vmatpush.msra.mxu0 %v644
    %674 = vmatpush.msra.mxu0 %v642
    %675 = vmatpush.msra.mxu0 %v640
    %676 = vmatpush.msra.mxu0 %v638
    %677 = vmatpush.msra.mxu0 %v636
    %678 = vmatpush.msra.mxu0 %v634
    %679 = vmatpush.msra.mxu0 %v632
    %680 = vmatpush.msra.mxu0 %v630
    %681 = vmatpush.msra.mxu0 %v628
    %682 = vmatmul.f32.gmra.mxu0 %v626
    %v683 = vpop.f32.mrf.mxu0
    %v684 = vadd.f32 %v662, %v683
    %685 = vdwg.mxu0
    %686 = vmatpush.msra.mxu0 %v659
    %687 = vmatpush.msra.mxu0 %v657
    %688 = vmatpush.msra.mxu0 %v655
    %689 = vmatpush.msra.mxu0 %v653
    %690 = vmatpush.msra.mxu0 %v651
    %691 = vmatpush.msra.mxu0 %v649
    %692 = vmatpush.msra.mxu0 %v647
    %693 = vmatpush.msra.mxu0 %v645
    %694 = vmatpush.msra.mxu0 %v643
    %695 = vmatpush.msra.mxu0 %v641
    %696 = vmatpush.msra.mxu0 %v639
    %697 = vmatpush.msra.mxu0 %v637
    %698 = vmatpush.msra.mxu0 %v635
    %699 = vmatpush.msra.mxu0 %v633
    %700 = vmatpush.msra.mxu0 %v631
    %701 = vmatpush.msra.mxu0 %v629
    %702 = vmatmul.f32.gmra.mxu0 %v626
    %v703 = vpop.f32.mrf.mxu0
    %v704 = vadd.f32 %v663, %v703
    %705 = vdwg.mxu0
    %v706 = vmax.f32 %v684, 0.0
    %v707 = vmax.f32 %v704, 0.0
    %v708 = vld [vmem:[#allocation7] sm:$0xff]
    %v709 = vld [vmem:[#allocation7 + $0x8] sm:$0xff]
    %v710 = vld [vmem:[#allocation7 + $0x10] sm:$0xff]
    %v711 = vld [vmem:[#allocation7 + $0x18] sm:$0xff]
    %v712 = vld [vmem:[#allocation7 + $0x20] sm:$0xff]
    %v713 = vld [vmem:[#allocation7 + $0x28] sm:$0xff]
    %v714 = vld [vmem:[#allocation7 + $0x30] sm:$0xff]
    %v715 = vld [vmem:[#allocation7 + $0x38] sm:$0xff]
    %v716 = vld [vmem:[#allocation7 + $0x40] sm:$0xff]
    %v717 = vld [vmem:[#allocation7 + $0x48] sm:$0xff]
    %v718 = vld [vmem:[#allocation7 + $0x50] sm:$0xff]
    %v719 = vld [vmem:[#allocation7 + $0x58] sm:$0xff]
    %v720 = vld [vmem:[#allocation7 + $0x60] sm:$0xff]
    %v721 = vld [vmem:[#allocation7 + $0x68] sm:$0xff]
    %v722 = vld [vmem:[#allocation7 + $0x70] sm:$0xff]
    %v723 = vld [vmem:[#allocation7 + $0x78] sm:$0xff]
    %v724 = vld [vmem:[#allocation7 + $0x80] sm:$0xff]
    %v725 = vld [vmem:[#allocation7 + $0x88] sm:$0xff]
    %v726 = vld [vmem:[#allocation7 + $0x90] sm:$0xff]
    %v727 = vld [vmem:[#allocation7 + $0x98] sm:$0xff]
    %v728 = vld [vmem:[#allocation7 + $0xa0] sm:$0xff]
    %v729 = vld [vmem:[#allocation7 + $0xa8] sm:$0xff]
    %v730 = vld [vmem:[#allocation7 + $0xb0] sm:$0xff]
    %v731 = vld [vmem:[#allocation7 + $0xb8] sm:$0xff]
    %v732 = vld [vmem:[#allocation7 + $0xc0] sm:$0xff]
    %v733 = vld [vmem:[#allocation7 + $0xc8] sm:$0xff]
    %v734 = vld [vmem:[#allocation7 + $0xd0] sm:$0xff]
    %v735 = vld [vmem:[#allocation7 + $0xd8] sm:$0xff]
    %v736 = vld [vmem:[#allocation7 + $0xe0] sm:$0xff]
    %v737 = vld [vmem:[#allocation7 + $0xe8] sm:$0xff]
    %v738 = vld [vmem:[#allocation7 + $0xf0] sm:$0xff]
    %v739 = vld [vmem:[#allocation7 + $0xf8] sm:$0xff]
    %v740 = vld [vmem:[#allocation7 + $0x100] sm:$0xff]
    %v741 = vld [vmem:[#allocation7 + $0x108] sm:$0xff]
    %v742 = vld [vmem:[#allocation7 + $0x110] sm:$0xff]
    %v743 = vld [vmem:[#allocation7 + $0x118] sm:$0xff]
    %v744 = vld [vmem:[#allocation7 + $0x120] sm:$0xff]
    %v745 = vld [vmem:[#allocation7 + $0x128] sm:$0xff]
    %v746 = vld [vmem:[#allocation7 + $0x130] sm:$0xff]
    %v747 = vld [vmem:[#allocation7 + $0x138] sm:$0xff]
    %v748 = vld [vmem:[#allocation7 + $0x140] sm:$0xff]
    %v749 = vld [vmem:[#allocation7 + $0x148] sm:$0xff]
    %v750 = vld [vmem:[#allocation7 + $0x150] sm:$0xff]
    %v751 = vld [vmem:[#allocation7 + $0x158] sm:$0xff]
    %v752 = vld [vmem:[#allocation7 + $0x160] sm:$0xff]
    %v753 = vld [vmem:[#allocation7 + $0x168] sm:$0xff]
    %v754 = vld [vmem:[#allocation7 + $0x170] sm:$0xff]
    %v755 = vld [vmem:[#allocation7 + $0x178] sm:$0xff]
    %v756 = vld [vmem:[#allocation7 + $0x180] sm:$0xff]
    %v757 = vld [vmem:[#allocation7 + $0x188] sm:$0xff]
    %v758 = vld [vmem:[#allocation7 + $0x190] sm:$0xff]
    %v759 = vld [vmem:[#allocation7 + $0x198] sm:$0xff]
    %v760 = vld [vmem:[#allocation7 + $0x1a0] sm:$0xff]
    %v761 = vld [vmem:[#allocation7 + $0x1a8] sm:$0xff]
    %v762 = vld [vmem:[#allocation7 + $0x1b0] sm:$0xff]
    %v763 = vld [vmem:[#allocation7 + $0x1b8] sm:$0xff]
    %v764 = vld [vmem:[#allocation7 + $0x1c0] sm:$0xff]
    %v765 = vld [vmem:[#allocation7 + $0x1c8] sm:$0xff]
    %v766 = vld [vmem:[#allocation7 + $0x1d0] sm:$0xff]
    %v767 = vld [vmem:[#allocation7 + $0x1d8] sm:$0xff]
    %v768 = vld [vmem:[#allocation7 + $0x1e0] sm:$0xff]
    %v769 = vld [vmem:[#allocation7 + $0x1e8] sm:$0xff]
    %v770 = vld [vmem:[#allocation7 + $0x1f0] sm:$0xff]
    %v771 = vld [vmem:[#allocation7 + $0x1f8] sm:$0xff]
    %v772 = vld [vmem:[#allocation7 + $0x200] sm:$0xff]
    %v773 = vld [vmem:[#allocation7 + $0x208] sm:$0xff]
    %v774 = vld [vmem:[#allocation7 + $0x210] sm:$0xff]
    %v775 = vld [vmem:[#allocation7 + $0x218] sm:$0xff]
    %v776 = vld [vmem:[#allocation7 + $0x220] sm:$0xff]
    %v777 = vld [vmem:[#allocation7 + $0x228] sm:$0xff]
    %v778 = vld [vmem:[#allocation7 + $0x230] sm:$0xff]
    %v779 = vld [vmem:[#allocation7 + $0x238] sm:$0xff]
    %v780 = vld [vmem:[#allocation7 + $0x240] sm:$0xff]
    %v781 = vld [vmem:[#allocation7 + $0x248] sm:$0xff]
    %v782 = vld [vmem:[#allocation7 + $0x250] sm:$0xff]
    %v783 = vld [vmem:[#allocation7 + $0x258] sm:$0xff]
    %v784 = vld [vmem:[#allocation7 + $0x260] sm:$0xff]
    %v785 = vld [vmem:[#allocation7 + $0x268] sm:$0xff]
    %v786 = vld [vmem:[#allocation7 + $0x270] sm:$0xff]
    %v787 = vld [vmem:[#allocation7 + $0x278] sm:$0xff]
    %v788 = vld [vmem:[#allocation7 + $0x280] sm:$0xff]
    %v789 = vld [vmem:[#allocation7 + $0x288] sm:$0xff]
    %v790 = vld [vmem:[#allocation7 + $0x290] sm:$0xff]
    %v791 = vld [vmem:[#allocation7 + $0x298] sm:$0xff]
    %v792 = vld [vmem:[#allocation7 + $0x2a0] sm:$0xff]
    %v793 = vld [vmem:[#allocation7 + $0x2a8] sm:$0xff]
    %v794 = vld [vmem:[#allocation7 + $0x2b0] sm:$0xff]
    %v795 = vld [vmem:[#allocation7 + $0x2b8] sm:$0xff]
    %v796 = vld [vmem:[#allocation7 + $0x2c0] sm:$0xff]
    %v797 = vld [vmem:[#allocation7 + $0x2c8] sm:$0xff]
    %v798 = vld [vmem:[#allocation7 + $0x2d0] sm:$0xff]
    %v799 = vld [vmem:[#allocation7 + $0x2d8] sm:$0xff]
    %v800 = vld [vmem:[#allocation7 + $0x2e0] sm:$0xff]
    %v801 = vld [vmem:[#allocation7 + $0x2e8] sm:$0xff]
    %v802 = vld [vmem:[#allocation7 + $0x2f0] sm:$0xff]
    %v803 = vld [vmem:[#allocation7 + $0x2f8] sm:$0xff]
    %v804 = vld [vmem:[#allocation7 + $0x300] sm:$0xff]
    %v805 = vld [vmem:[#allocation7 + $0x308] sm:$0xff]
    %v806 = vld [vmem:[#allocation7 + $0x310] sm:$0xff]
    %v807 = vld [vmem:[#allocation7 + $0x318] sm:$0xff]
    %v808 = vld [vmem:[#allocation7 + $0x320] sm:$0xff]
    %v809 = vld [vmem:[#allocation7 + $0x328] sm:$0xff]
    %v810 = vld [vmem:[#allocation7 + $0x330] sm:$0xff]
    %v811 = vld [vmem:[#allocation7 + $0x338] sm:$0xff]
    %v812 = vld [vmem:[#allocation7 + $0x340] sm:$0xff]
    %v813 = vld [vmem:[#allocation7 + $0x348] sm:$0xff]
    %v814 = vld [vmem:[#allocation7 + $0x350] sm:$0xff]
    %v815 = vld [vmem:[#allocation7 + $0x358] sm:$0xff]
    %v816 = vld [vmem:[#allocation7 + $0x360] sm:$0xff]
    %v817 = vld [vmem:[#allocation7 + $0x368] sm:$0xff]
    %v818 = vld [vmem:[#allocation7 + $0x370] sm:$0xff]
    %v819 = vld [vmem:[#allocation7 + $0x378] sm:$0xff]
    %v820 = vld [vmem:[#allocation7 + $0x380] sm:$0xff]
    %v821 = vld [vmem:[#allocation7 + $0x388] sm:$0xff]
    %v822 = vld [vmem:[#allocation7 + $0x390] sm:$0xff]
    %v823 = vld [vmem:[#allocation7 + $0x398] sm:$0xff]
    %v824 = vld [vmem:[#allocation7 + $0x3a0] sm:$0xff]
    %v825 = vld [vmem:[#allocation7 + $0x3a8] sm:$0xff]
    %v826 = vld [vmem:[#allocation7 + $0x3b0] sm:$0xff]
    %v827 = vld [vmem:[#allocation7 + $0x3b8] sm:$0xff]
    %v828 = vld [vmem:[#allocation7 + $0x3c0] sm:$0xff]
    %v829 = vld [vmem:[#allocation7 + $0x3c8] sm:$0xff]
    %v830 = vld [vmem:[#allocation7 + $0x3d0] sm:$0xff]
    %v831 = vld [vmem:[#allocation7 + $0x3d8] sm:$0xff]
    %v832 = vld [vmem:[#allocation7 + $0x3e0] sm:$0xff]
    %v833 = vld [vmem:[#allocation7 + $0x3e8] sm:$0xff]
    %v834 = vld [vmem:[#allocation7 + $0x3f0] sm:$0xff]
    %v835 = vld [vmem:[#allocation7 + $0x3f8] sm:$0xff]
    %v836 = vld [vmem:[#allocation7 + $0x400] sm:$0xff]
    %v837 = vld [vmem:[#allocation7 + $0x408] sm:$0xff]
    %v838 = vld [vmem:[#allocation7 + $0x410] sm:$0xff]
    %v839 = vld [vmem:[#allocation7 + $0x418] sm:$0xff]
    %v840 = vld [vmem:[#allocation7 + $0x420] sm:$0xff]
    %v841 = vld [vmem:[#allocation7 + $0x428] sm:$0xff]
    %v842 = vld [vmem:[#allocation7 + $0x430] sm:$0xff]
    %v843 = vld [vmem:[#allocation7 + $0x438] sm:$0xff]
    %v844 = vld [vmem:[#allocation7 + $0x440] sm:$0xff]
    %v845 = vld [vmem:[#allocation7 + $0x448] sm:$0xff]
    %v846 = vld [vmem:[#allocation7 + $0x450] sm:$0xff]
    %v847 = vld [vmem:[#allocation7 + $0x458] sm:$0xff]
    %v848 = vld [vmem:[#allocation7 + $0x460] sm:$0xff]
    %v849 = vld [vmem:[#allocation7 + $0x468] sm:$0xff]
    %v850 = vld [vmem:[#allocation7 + $0x470] sm:$0xff]
    %v851 = vld [vmem:[#allocation7 + $0x478] sm:$0xff]
    %v852 = vld [vmem:[#allocation7 + $0x480] sm:$0xff]
    %v853 = vld [vmem:[#allocation7 + $0x488] sm:$0xff]
    %v854 = vld [vmem:[#allocation7 + $0x490] sm:$0xff]
    %v855 = vld [vmem:[#allocation7 + $0x498] sm:$0xff]
    %v856 = vld [vmem:[#allocation7 + $0x4a0] sm:$0xff]
    %v857 = vld [vmem:[#allocation7 + $0x4a8] sm:$0xff]
    %v858 = vld [vmem:[#allocation7 + $0x4b0] sm:$0xff]
    %v859 = vld [vmem:[#allocation7 + $0x4b8] sm:$0xff]
    %v860 = vld [vmem:[#allocation7 + $0x4c0] sm:$0xff]
    %v861 = vld [vmem:[#allocation7 + $0x4c8] sm:$0xff]
    %v862 = vld [vmem:[#allocation7 + $0x4d0] sm:$0xff]
    %v863 = vld [vmem:[#allocation7 + $0x4d8] sm:$0xff]
    %v864 = vld [vmem:[#allocation7 + $0x4e0] sm:$0xff]
    %v865 = vld [vmem:[#allocation7 + $0x4e8] sm:$0xff]
    %v866 = vld [vmem:[#allocation7 + $0x4f0] sm:$0xff]
    %v867 = vld [vmem:[#allocation7 + $0x4f8] sm:$0xff]
    %v868 = vld [vmem:[#allocation7 + $0x500] sm:$0xff]
    %v869 = vld [vmem:[#allocation7 + $0x508] sm:$0xff]
    %v870 = vld [vmem:[#allocation7 + $0x510] sm:$0xff]
    %v871 = vld [vmem:[#allocation7 + $0x518] sm:$0xff]
    %v872 = vld [vmem:[#allocation7 + $0x520] sm:$0xff]
    %v873 = vld [vmem:[#allocation7 + $0x528] sm:$0xff]
    %v874 = vld [vmem:[#allocation7 + $0x530] sm:$0xff]
    %v875 = vld [vmem:[#allocation7 + $0x538] sm:$0xff]
    %v876 = vld [vmem:[#allocation7 + $0x540] sm:$0xff]
    %v877 = vld [vmem:[#allocation7 + $0x548] sm:$0xff]
    %v878 = vld [vmem:[#allocation7 + $0x550] sm:$0xff]
    %v879 = vld [vmem:[#allocation7 + $0x558] sm:$0xff]
    %v880 = vld [vmem:[#allocation7 + $0x560] sm:$0xff]
    %v881 = vld [vmem:[#allocation7 + $0x568] sm:$0xff]
    %v882 = vld [vmem:[#allocation7 + $0x570] sm:$0xff]
    %v883 = vld [vmem:[#allocation7 + $0x578] sm:$0xff]
    %v884 = vld [vmem:[#allocation7 + $0x580] sm:$0xff]
    %v885 = vld [vmem:[#allocation7 + $0x588] sm:$0xff]
    %v886 = vld [vmem:[#allocation7 + $0x590] sm:$0xff]
    %v887 = vld [vmem:[#allocation7 + $0x598] sm:$0xff]
    %v888 = vld [vmem:[#allocation7 + $0x5a0] sm:$0xff]
    %v889 = vld [vmem:[#allocation7 + $0x5a8] sm:$0xff]
    %v890 = vld [vmem:[#allocation7 + $0x5b0] sm:$0xff]
    %v891 = vld [vmem:[#allocation7 + $0x5b8] sm:$0xff]
    %v892 = vld [vmem:[#allocation7 + $0x5c0] sm:$0xff]
    %v893 = vld [vmem:[#allocation7 + $0x5c8] sm:$0xff]
    %v894 = vld [vmem:[#allocation7 + $0x5d0] sm:$0xff]
    %v895 = vld [vmem:[#allocation7 + $0x5d8] sm:$0xff]
    %v896 = vld [vmem:[#allocation7 + $0x5e0] sm:$0xff]
    %v897 = vld [vmem:[#allocation7 + $0x5e8] sm:$0xff]
    %v898 = vld [vmem:[#allocation7 + $0x5f0] sm:$0xff]
    %v899 = vld [vmem:[#allocation7 + $0x5f8] sm:$0xff]
    %v900 = vld [vmem:[#allocation9] sm:$0x3f]
    %v902 = vperm.slane %v900, 0
    %v903 = vperm.slane %v900, 1
    %v904 = vperm.slane %v900, 2
    %v905 = vperm.slane %v900, 3
    %v906 = vperm.slane %v900, 4
    %v907 = vperm.slane %v900, 5
    %914 = vmatpush.msra.mxu0 %v798
    %915 = vmatpush.msra.mxu0 %v792
    %916 = vmatpush.msra.mxu0 %v786
    %917 = vmatpush.msra.mxu0 %v780
    %918 = vmatpush.msra.mxu0 %v774
    %919 = vmatpush.msra.mxu0 %v768
    %920 = vmatpush.msra.mxu0 %v762
    %921 = vmatpush.msra.mxu0 %v756
    %922 = vmatpush.msra.mxu0 %v750
    %923 = vmatpush.msra.mxu0 %v744
    %924 = vmatpush.msra.mxu0 %v738
    %925 = vmatpush.msra.mxu0 %v732
    %926 = vmatpush.msra.mxu0 %v726
    %927 = vmatpush.msra.mxu0 %v720
    %928 = vmatpush.msra.mxu0 %v714
    %929 = vmatpush.msra.mxu0 %v708
    %930 = vmatmul.f32.gmra.mxu0 %v706
    %v931 = vpop.f32.mrf.mxu0
    %v932 = vadd.f32 %v902, %v931
    %933 = vdwg.mxu0
    %934 = vmatpush.msra.mxu0 %v894
    %935 = vmatpush.msra.mxu0 %v888
    %936 = vmatpush.msra.mxu0 %v882
    %937 = vmatpush.msra.mxu0 %v876
    %938 = vmatpush.msra.mxu0 %v870
    %939 = vmatpush.msra.mxu0 %v864
    %940 = vmatpush.msra.mxu0 %v858
    %941 = vmatpush.msra.mxu0 %v852
    %942 = vmatpush.msra.mxu0 %v846
    %943 = vmatpush.msra.mxu0 %v840
    %944 = vmatpush.msra.mxu0 %v834
    %945 = vmatpush.msra.mxu0 %v828
    %946 = vmatpush.msra.mxu0 %v822
    %947 = vmatpush.msra.mxu0 %v816
    %948 = vmatpush.msra.mxu0 %v810
    %949 = vmatpush.msra.mxu0 %v804
    %950 = vmatmul.f32.gmra.mxu0 %v707
    %v951 = vpop.f32.mrf.mxu0
    %v952 = vadd.f32 %v932, %v951
    %953 = vdwg.mxu0
    %954 = vmatpush.msra.mxu0 %v799
    %955 = vmatpush.msra.mxu0 %v793
    %956 = vmatpush.msra.mxu0 %v787
    %957 = vmatpush.msra.mxu0 %v781
    %958 = vmatpush.msra.mxu0 %v775
    %959 = vmatpush.msra.mxu0 %v769
    %960 = vmatpush.msra.mxu0 %v763
    %961 = vmatpush.msra.mxu0 %v757
    %962 = vmatpush.msra.mxu0 %v751
    %963 = vmatpush.msra.mxu0 %v745
    %964 = vmatpush.msra.mxu0 %v739
    %965 = vmatpush.msra.mxu0 %v733
    %966 = vmatpush.msra.mxu0 %v727
    %967 = vmatpush.msra.mxu0 %v721
    %968 = vmatpush.msra.mxu0 %v715
    %969 = vmatpush.msra.mxu0 %v709
    %970 = vmatmul.f32.gmra.mxu0 %v706
    %v971 = vpop.f32.mrf.mxu0
    %v972 = vadd.f32 %v903, %v971
    %973 = vdwg.mxu0
    %974 = vmatpush.msra.mxu0 %v895
    %975 = vmatpush.msra.mxu0 %v889
    %976 = vmatpush.msra.mxu0 %v883
    %977 = vmatpush.msra.mxu0 %v877
    %978 = vmatpush.msra.mxu0 %v871
    %979 = vmatpush.msra.mxu0 %v865
    %980 = vmatpush.msra.mxu0 %v859
    %981 = vmatpush.msra.mxu0 %v853
    %982 = vmatpush.msra.mxu0 %v847
    %983 = vmatpush.msra.mxu0 %v841
    %984 = vmatpush.msra.mxu0 %v835
    %985 = vmatpush.msra.mxu0 %v829
    %986 = vmatpush.msra.mxu0 %v823
    %987 = vmatpush.msra.mxu0 %v817
    %988 = vmatpush.msra.mxu0 %v811
    %989 = vmatpush.msra.mxu0 %v805
    %990 = vmatmul.f32.gmra.mxu0 %v707
    %v991 = vpop.f32.mrf.mxu0
    %v992 = vadd.f32 %v972, %v991
    %993 = vdwg.mxu0
    %994 = vmatpush.msra.mxu0 %v800
    %995 = vmatpush.msra.mxu0 %v794
    %996 = vmatpush.msra.mxu0 %v788
    %997 = vmatpush.msra.mxu0 %v782
    %998 = vmatpush.msra.mxu0 %v776
    %999 = vmatpush.msra.mxu0 %v770
    %1000 = vmatpush.msra.mxu0 %v764
    %1001 = vmatpush.msra.mxu0 %v758
    %1002 = vmatpush.msra.mxu0 %v752
    %1003 = vmatpush.msra.mxu0 %v746
    %1004 = vmatpush.msra.mxu0 %v740
    %1005 = vmatpush.msra.mxu0 %v734
    %1006 = vmatpush.msra.mxu0 %v728
    %1007 = vmatpush.msra.mxu0 %v722
    %1008 = vmatpush.msra.mxu0 %v716
    %1009 = vmatpush.msra.mxu0 %v710
    %1010 = vmatmul.f32.gmra.mxu0 %v706
    %v1011 = vpop.f32.mrf.mxu0
    %v1012 = vadd.f32 %v904, %v1011
    %1013 = vdwg.mxu0
    %1014 = vmatpush.msra.mxu0 %v896
    %1015 = vmatpush.msra.mxu0 %v890
    %1016 = vmatpush.msra.mxu0 %v884
    %1017 = vmatpush.msra.mxu0 %v878
    %1018 = vmatpush.msra.mxu0 %v872
    %1019 = vmatpush.msra.mxu0 %v866
    %1020 = vmatpush.msra.mxu0 %v860
    %1021 = vmatpush.msra.mxu0 %v854
    %1022 = vmatpush.msra.mxu0 %v848
    %1023 = vmatpush.msra.mxu0 %v842
    %1024 = vmatpush.msra.mxu0 %v836
    %1025 = vmatpush.msra.mxu0 %v830
    %1026 = vmatpush.msra.mxu0 %v824
    %1027 = vmatpush.msra.mxu0 %v818
    %1028 = vmatpush.msra.mxu0 %v812
    %1029 = vmatpush.msra.mxu0 %v806
    %1030 = vmatmul.f32.gmra.mxu0 %v707
    %v1031 = vpop.f32.mrf.mxu0
    %v1032 = vadd.f32 %v1012, %v1031
    %1033 = vdwg.mxu0
    %1034 = vmatpush.msra.mxu0 %v801
    %1035 = vmatpush.msra.mxu0 %v795
    %1036 = vmatpush.msra.mxu0 %v789
    %1037 = vmatpush.msra.mxu0 %v783
    %1038 = vmatpush.msra.mxu0 %v777
    %1039 = vmatpush.msra.mxu0 %v771
    %1040 = vmatpush.msra.mxu0 %v765
    %1041 = vmatpush.msra.mxu0 %v759
    %1042 = vmatpush.msra.mxu0 %v753
    %1043 = vmatpush.msra.mxu0 %v747
    %1044 = vmatpush.msra.mxu0 %v741
    %1045 = vmatpush.msra.mxu0 %v735
    %1046 = vmatpush.msra.mxu0 %v729
    %1047 = vmatpush.msra.mxu0 %v723
    %1048 = vmatpush.msra.mxu0 %v717
    %1049 = vmatpush.msra.mxu0 %v711
    %1050 = vmatmul.f32.gmra.mxu0 %v706
    %v1051 = vpop.f32.mrf.mxu0
    %v1052 = vadd.f32 %v905, %v1051
    %1053 = vdwg.mxu0
    %1054 = vmatpush.msra.mxu0 %v897
    %1055 = vmatpush.msra.mxu0 %v891
    %1056 = vmatpush.msra.mxu0 %v885
    %1057 = vmatpush.msra.mxu0 %v879
    %1058 = vmatpush.msra.mxu0 %v873
    %1059 = vmatpush.msra.mxu0 %v867
    %1060 = vmatpush.msra.mxu0 %v861
    %1061 = vmatpush.msra.mxu0 %v855
    %1062 = vmatpush.msra.mxu0 %v849
    %1063 = vmatpush.msra.mxu0 %v843
    %1064 = vmatpush.msra.mxu0 %v837
    %1065 = vmatpush.msra.mxu0 %v831
    %1066 = vmatpush.msra.mxu0 %v825
    %1067 = vmatpush.msra.mxu0 %v819
    %1068 = vmatpush.msra.mxu0 %v813
    %1069 = vmatpush.msra.mxu0 %v807
    %1070 = vmatmul.f32.gmra.mxu0 %v707
    %v1071 = vpop.f32.mrf.mxu0
    %v1072 = vadd.f32 %v1052, %v1071
    %1073 = vdwg.mxu0
    %1074 = vmatpush.msra.mxu0 %v802
    %1075 = vmatpush.msra.mxu0 %v796
    %1076 = vmatpush.msra.mxu0 %v790
    %1077 = vmatpush.msra.mxu0 %v784
    %1078 = vmatpush.msra.mxu0 %v778
    %1079 = vmatpush.msra.mxu0 %v772
    %1080 = vmatpush.msra.mxu0 %v766
    %1081 = vmatpush.msra.mxu0 %v760
    %1082 = vmatpush.msra.mxu0 %v754
    %1083 = vmatpush.msra.mxu0 %v748
    %1084 = vmatpush.msra.mxu0 %v742
    %1085 = vmatpush.msra.mxu0 %v736
    %1086 = vmatpush.msra.mxu0 %v730
    %1087 = vmatpush.msra.mxu0 %v724
    %1088 = vmatpush.msra.mxu0 %v718
    %1089 = vmatpush.msra.mxu0 %v712
    %1090 = vmatmul.f32.gmra.mxu0 %v706
    %v1091 = vpop.f32.mrf.mxu0
    %v1092 = vadd.f32 %v906, %v1091
    %1093 = vdwg.mxu0
    %1094 = vmatpush.msra.mxu0 %v898
    %1095 = vmatpush.msra.mxu0 %v892
    %1096 = vmatpush.msra.mxu0 %v886
    %1097 = vmatpush.msra.mxu0 %v880
    %1098 = vmatpush.msra.mxu0 %v874
    %1099 = vmatpush.msra.mxu0 %v868
    %1100 = vmatpush.msra.mxu0 %v862
    %1101 = vmatpush.msra.mxu0 %v856
    %1102 = vmatpush.msra.mxu0 %v850
    %1103 = vmatpush.msra.mxu0 %v844
    %1104 = vmatpush.msra.mxu0 %v838
    %1105 = vmatpush.msra.mxu0 %v832
    %1106 = vmatpush.msra.mxu0 %v826
    %1107 = vmatpush.msra.mxu0 %v820
    %1108 = vmatpush.msra.mxu0 %v814
    %1109 = vmatpush.msra.mxu0 %v808
    %1110 = vmatmul.f32.gmra.mxu0 %v707
    %v1111 = vpop.f32.mrf.mxu0
    %v1112 = vadd.f32 %v1092, %v1111
    %1113 = vdwg.mxu0
    %1114 = vmatpush.msra.mxu0 %v803
    %1115 = vmatpush.msra.mxu0 %v797
    %1116 = vmatpush.msra.mxu0 %v791
    %1117 = vmatpush.msra.mxu0 %v785
    %1118 = vmatpush.msra.mxu0 %v779
    %1119 = vmatpush.msra.mxu0 %v773
    %1120 = vmatpush.msra.mxu0 %v767
    %1121 = vmatpush.msra.mxu0 %v761
    %1122 = vmatpush.msra.mxu0 %v755
    %1123 = vmatpush.msra.mxu0 %v749
    %1124 = vmatpush.msra.mxu0 %v743
    %1125 = vmatpush.msra.mxu0 %v737
    %1126 = vmatpush.msra.mxu0 %v731
    %1127 = vmatpush.msra.mxu0 %v725
    %1128 = vmatpush.msra.mxu0 %v719
    %1129 = vmatpush.msra.mxu0 %v713
    %1130 = vmatmul.f32.gmra.mxu0 %v706
    %v1131 = vpop.f32.mrf.mxu0
    %v1132 = vadd.f32 %v907, %v1131
    %1133 = vdwg.mxu0
    %1134 = vmatpush.msra.mxu0 %v899
    %1135 = vmatpush.msra.mxu0 %v893
    %1136 = vmatpush.msra.mxu0 %v887
    %1137 = vmatpush.msra.mxu0 %v881
    %1138 = vmatpush.msra.mxu0 %v875
    %1139 = vmatpush.msra.mxu0 %v869
    %1140 = vmatpush.msra.mxu0 %v863
    %1141 = vmatpush.msra.mxu0 %v857
    %1142 = vmatpush.msra.mxu0 %v851
    %1143 = vmatpush.msra.mxu0 %v845
    %1144 = vmatpush.msra.mxu0 %v839
    %1145 = vmatpush.msra.mxu0 %v833
    %1146 = vmatpush.msra.mxu0 %v827
    %1147 = vmatpush.msra.mxu0 %v821
    %1148 = vmatpush.msra.mxu0 %v815
    %1149 = vmatpush.msra.mxu0 %v809
    %1150 = vmatmul.f32.gmra.mxu0 %v707
    %v1151 = vpop.f32.mrf.mxu0
    %v1152 = vadd.f32 %v1132, %v1151
    %1153 = vdwg.mxu0
    %v1154 = vxor.u32 %v952, 2147483648
    %v1155 = vxor.u32 %v992, 2147483648
    %v1156 = vxor.u32 %v1032, 2147483648
    %v1157 = vxor.u32 %v1072, 2147483648
    %v1158 = vxor.u32 %v1112, 2147483648
    %v1159 = vxor.u32 %v1152, 2147483648
    %v1160 = vmul.f32 %v1154, 1.442695
    %v1161 = vpow.pop %v1160
    %v1162 = vmul.f32 %v1155, 1.442695
    %v1163 = vpow.pop %v1162
    %v1164 = vmul.f32 %v1156, 1.442695
    %v1165 = vpow.pop %v1164
    %v1166 = vmul.f32 %v1157, 1.442695
    %v1167 = vpow.pop %v1166
    %v1168 = vmul.f32 %v1158, 1.442695
    %v1169 = vpow.pop %v1168
    %v1170 = vmul.f32 %v1159, 1.442695
    %v1171 = vpow.pop %v1170
    %v1172 = vadd.f32 %v1161, 1.0
    %v1173 = vadd.f32 %v1163, 1.0
    %v1174 = vadd.f32 %v1165, 1.0
    %v1175 = vadd.f32 %v1167, 1.0
    %v1176 = vadd.f32 %v1169, 1.0
    %v1177 = vadd.f32 %v1171, 1.0
    %v1178 = vrcp.pop %v1172
    %v1179 = vmul.f32 %v1172, %v1178
    %v1180 = vsub.f32 1.0, %v1179
    %v1181 = vmul.f32 %v1178, %v1180
    %v1182 = vadd.f32 %v1178, %v1181
    %vm1183 = vweird.f32 %v1172
    %vm1184 = vweird.f32 %v1178
    %vm1185 = vmor %vm1183, %vm1184
    %v1186 = vsel %vm1185, %v1178, %v1182
    %v1187 = vand.u32 2147483647, %v1172
    %vm1188 = vcmp.eq.f32.partialorder %v1187, 8.507059e+37
    %v1189 = vand.u32 %v1172, 2147483648
    %v1190 = vor.u32 1.1754944e-38, %v1189
    %v1191 = vsel %vm1188, %v1190, %v1186
    %v1192 = vmul.f32 1.0, %v1191
    %v1193 = vrcp.pop %v1173
    %v1194 = vmul.f32 %v1173, %v1193
    %v1195 = vsub.f32 1.0, %v1194
    %v1196 = vmul.f32 %v1193, %v1195
    %v1197 = vadd.f32 %v1193, %v1196
    %vm1198 = vweird.f32 %v1173
    %vm1199 = vweird.f32 %v1193
    %vm1200 = vmor %vm1198, %vm1199
    %v1201 = vsel %vm1200, %v1193, %v1197
    %v1202 = vand.u32 2147483647, %v1173
    %vm1203 = vcmp.eq.f32.partialorder %v1202, 8.507059e+37
    %v1204 = vand.u32 %v1173, 2147483648
    %v1205 = vor.u32 1.1754944e-38, %v1204
    %v1206 = vsel %vm1203, %v1205, %v1201
    %v1207 = vmul.f32 1.0, %v1206
    %v1208 = vrcp.pop %v1174
    %v1209 = vmul.f32 %v1174, %v1208
    %v1210 = vsub.f32 1.0, %v1209
    %v1211 = vmul.f32 %v1208, %v1210
    %v1212 = vadd.f32 %v1208, %v1211
    %vm1213 = vweird.f32 %v1174
    %vm1214 = vweird.f32 %v1208
    %vm1215 = vmor %vm1213, %vm1214
    %v1216 = vsel %vm1215, %v1208, %v1212
    %v1217 = vand.u32 2147483647, %v1174
    %vm1218 = vcmp.eq.f32.partialorder %v1217, 8.507059e+37
    %v1219 = vand.u32 %v1174, 2147483648
    %v1220 = vor.u32 1.1754944e-38, %v1219
    %v1221 = vsel %vm1218, %v1220, %v1216
    %v1222 = vmul.f32 1.0, %v1221
    %v1223 = vrcp.pop %v1175
    %v1224 = vmul.f32 %v1175, %v1223
    %v1225 = vsub.f32 1.0, %v1224
    %v1226 = vmul.f32 %v1223, %v1225
    %v1227 = vadd.f32 %v1223, %v1226
    %vm1228 = vweird.f32 %v1175
    %vm1229 = vweird.f32 %v1223
    %vm1230 = vmor %vm1228, %vm1229
    %v1231 = vsel %vm1230, %v1223, %v1227
    %v1232 = vand.u32 2147483647, %v1175
    %vm1233 = vcmp.eq.f32.partialorder %v1232, 8.507059e+37
    %v1234 = vand.u32 %v1175, 2147483648
    %v1235 = vor.u32 1.1754944e-38, %v1234
    %v1236 = vsel %vm1233, %v1235, %v1231
    %v1237 = vmul.f32 1.0, %v1236
    %v1238 = vrcp.pop %v1176
    %v1239 = vmul.f32 %v1176, %v1238
    %v1240 = vsub.f32 1.0, %v1239
    %v1241 = vmul.f32 %v1238, %v1240
    %v1242 = vadd.f32 %v1238, %v1241
    %vm1243 = vweird.f32 %v1176
    %vm1244 = vweird.f32 %v1238
    %vm1245 = vmor %vm1243, %vm1244
    %v1246 = vsel %vm1245, %v1238, %v1242
    %v1247 = vand.u32 2147483647, %v1176
    %vm1248 = vcmp.eq.f32.partialorder %v1247, 8.507059e+37
    %v1249 = vand.u32 %v1176, 2147483648
    %v1250 = vor.u32 1.1754944e-38, %v1249
    %v1251 = vsel %vm1248, %v1250, %v1246
    %v1252 = vmul.f32 1.0, %v1251
    %v1253 = vrcp.pop %v1177
    %v1254 = vmul.f32 %v1177, %v1253
    %v1255 = vsub.f32 1.0, %v1254
    %v1256 = vmul.f32 %v1253, %v1255
    %v1257 = vadd.f32 %v1253, %v1256
    %vm1258 = vweird.f32 %v1177
    %vm1259 = vweird.f32 %v1253
    %vm1260 = vmor %vm1258, %vm1259
    %v1261 = vsel %vm1260, %v1253, %v1257
    %v1262 = vand.u32 2147483647, %v1177
    %vm1263 = vcmp.eq.f32.partialorder %v1262, 8.507059e+37
    %v1264 = vand.u32 %v1177, 2147483648
    %v1265 = vor.u32 1.1754944e-38, %v1264
    %v1266 = vsel %vm1263, %v1265, %v1261
    %v1267 = vmul.f32 1.0, %v1266
    %1268 = vst [vmem:[%s9] sm:$0xff] %v1192
    %1269 = vst [vmem:[%s9 + $0x8] sm:$0xff] %v1207
    %1270 = vst [vmem:[%s9 + $0x10] sm:$0xff] %v1222
    %1271 = vst [vmem:[%s9 + $0x18] sm:$0xff] %v1237
    %1272 = vst [vmem:[%s9 + $0x20] sm:$0xff] %v1252
    %1273 = vst [vmem:[%s9 + $0x28] sm:$0xff] %v1267
    // Predicated region
    $region58: #{ae_forward.1} parent=1 // pred_check
      _
    $region59: #{ae_forward.1} parent=1 // pred_check_branch
      %1275 = sbr.rel (0) target = $region61
    $region60: #{ae_forward.1} parent=1 // pred_region
      _
    $region61: #{ae_forward.1} parent=1 // pred_fallthru
      _
    // Predicated region
    $region62: #{ae_forward.1} parent=1 // pred_check
      _
    $region63: #{ae_forward.1} parent=1 // pred_check_branch
      %1277 = sbr.rel (0) target = $region65
    $region64: #{ae_forward.1} parent=1 // pred_region
      _
    $region65: #{ae_forward.1} parent=1 // pred_fallthru
      _
    %1278 = vsyncpa [#allocation3], 1
    %1279 = vsyncpa [#allocation5], 1
    %1280 = vsyncpa [#allocation8], 1

</llo_original>
